<compile_context>
chip_gen: v7x
topology: tpu7x:2x2x1
jax: 0.10.0
libtpu: 0.0.40
codegen_flags: <defaults>
</compile_context>

<pallas_src>
import functools

import jax
import jax.numpy as jnp
import numpy as np
from jax.experimental import pallas as pl
from jax.experimental.pallas import tpu as pltpu


# ----------------------------------------------------------------------------
# Fused Pallas kernel: n_layers x LSTM + final Linear on the last timestep.
# ----------------------------------------------------------------------------
def _fused_lstm_fc_kernel(*refs, n_layers, hidden, seq_len, batch):
    """refs = (x2d, [wih, whh, bias] * n_layers, fc_w, fc_b, out).

    x2d is the time-major flattened input (S*B, D_in) so each layer's input
    projection is a single MXU matmul; h/c live purely in vregs.
    """
    x2d_ref = refs[0]
    layer_refs = []
    idx = 1
    for _ in range(n_layers):
        layer_refs.append((refs[idx], refs[idx + 1], refs[idx + 2]))
        idx += 3
    fc_w_ref, fc_b_ref, out_ref = refs[idx], refs[idx + 1], refs[idx + 2]

    S, B, H = seq_len, batch, hidden
    G = 4 * H

    # Static lane mask selecting the `g` (tanh) gate columns; i/f/o use sigmoid.
    lane = jax.lax.broadcasted_iota(jnp.int32, (B, G), 1)
    is_g = (lane >= 2 * H) & (lane < 3 * H)

    layer_in_2d = x2d_ref[...].astype(jnp.float32)      # (S*B, D_in_layer)

    last_h = None
    for l, (wih_ref, whh_ref, b_ref) in enumerate(layer_refs):
        # Hoisted input projection for the whole sequence: one MXU push,
        # bias folded in once (b already = b_ih + b_hh).
        gx = (
            jnp.dot(layer_in_2d, wih_ref[...], preferred_element_type=jnp.float32)
            + b_ref[...]
        )                                                # (S*B, 4H)
        whh = whh_ref[...]                               # (H, 4H)

        # hidden_cell is None in the PyTorch module -> zero init each layer.
        h = jnp.zeros((B, H), jnp.float32)
        c = jnp.zeros((B, H), jnp.float32)

        is_last_layer = l == n_layers - 1
        hs = []
        # S is small & static: fully unrolled recurrence, h/c stay in vregs.
        for t in range(S):
            gates = gx[t * B:(t + 1) * B, :] + jnp.dot(
                h, whh, preferred_element_type=jnp.float32)   # (B, 4H)
            sig = jax.nn.sigmoid(gates)     # full-vreg EUP push
            th = jnp.tanh(gates)            # full-vreg EUP push
            act = jnp.where(is_g, th, sig)  # VPU select
            i = act[:, 0 * H:1 * H]
            f = act[:, 1 * H:2 * H]
            g = act[:, 2 * H:3 * H]
            o = act[:, 3 * H:4 * H]
            c = f * c + i * g
            h = o * jnp.tanh(c)
            if not is_last_layer:
                hs.append(h)

        if is_last_layer:
            last_h = h                                   # only last timestep needed
        else:
            # Time-major (S*B, H) input for the next layer, kept on-chip.
            layer_in_2d = jnp.concatenate(hs, axis=0)

    # Final Linear fused in: (B, H) @ (H, D_out) + b  -> single small store.
    y = (
        jnp.dot(last_h, fc_w_ref[...], preferred_element_type=jnp.float32)
        + fc_b_ref[...]
    )
    out_ref[...] = y.astype(out_ref.dtype)


# ----------------------------------------------------------------------------
# Wrapper
# ----------------------------------------------------------------------------
@jax.jit
def lstm_model_forward(x, params):
    """x: (B, S, D_in) batch-first, like the PyTorch module. Returns (B, 1, D_out)."""
    B, S, D_in = x.shape
    H = params["layers"][0][1].shape[0]          # whh_t is (H, 4H)
    D_out = params["fc_w_t"].shape[1]
    n_layers = len(params["layers"])

    # Time-major flatten (row = t*B + b) so each layer's x-projection is one matmul.
    x2d = jnp.transpose(x, (1, 0, 2)).reshape(S * B, D_in)

    flat_weights = []
    for (wih_t, whh_t, bias) in params["layers"]:
        flat_weights += [wih_t, whh_t, bias]

    n_inputs = 1 + len(flat_weights) + 2
    kernel = functools.partial(
        _fused_lstm_fc_kernel,
        n_layers=n_layers, hidden=H, seq_len=S, batch=B,
    )
    y = pl.pallas_call(
        kernel,
        out_shape=jax.ShapeDtypeStruct((B, D_out), jnp.float32),
        # No grid: every (tiny) operand is resident in VMEM for the whole call,
        # weights are not double-buffered, and the recurrence runs fully
        # in-kernel with zero per-step grid/DMA overhead.
        in_specs=[pl.BlockSpec(memory_space=pltpu.MemorySpace.VMEM)] * n_inputs,
        out_specs=pl.BlockSpec(memory_space=pltpu.MemorySpace.VMEM),
    )(x2d, *flat_weights, params["fc_w_t"], params["fc_b"])

    return y[:, None, :]                          # == fc(out[:, -1:, :])


# ----------------------------------------------------------------------------
# Deterministic parameter init (PyTorch-style uniform(-1/sqrt(H), 1/sqrt(H)))
# ----------------------------------------------------------------------------
def init_params(key, d_in, d_model, n_layers, d_out):
    params = {"layers": []}
    bound = 1.0 / np.sqrt(d_model)
    for layer in range(n_layers):
        in_sz = d_in if layer == 0 else d_model
        key, k1, k2, k3, k4 = jax.random.split(key, 5)
        w_ih = jax.random.uniform(k1, (4 * d_model, in_sz), jnp.float32, -bound, bound)
        w_hh = jax.random.uniform(k2, (4 * d_model, d_model), jnp.float32, -bound, bound)
        b_ih = jax.random.uniform(k3, (4 * d_model,), jnp.float32, -bound, bound)
        b_hh = jax.random.uniform(k4, (4 * d_model,), jnp.float32, -bound, bound)
        params["layers"].append(
            (w_ih.T, w_hh.T, (b_ih + b_hh)[None, :])   # pre-transposed for kernels
        )
    key, k1, k2 = jax.random.split(key, 3)
    fc_w = jax.random.uniform(k1, (d_out, d_model), jnp.float32, -bound, bound)
    fc_b = jax.random.uniform(k2, (d_out,), jnp.float32, -bound, bound)
    params["fc_w_t"] = fc_w.T
    params["fc_b"] = fc_b[None, :]
    return params


# ----------------------------------------------------------------------------
# Pure-JAX reference (for correctness check)
# ----------------------------------------------------------------------------
def lstm_model_reference(x, params):
    B = x.shape[0]
    h_seq = jnp.transpose(x, (1, 0, 2))  # (S, B, D)
    for (wih_t, whh_t, bias) in params["layers"]:
        H = whh_t.shape[0]
        h0 = jnp.zeros((B, H), jnp.float32)
        c0 = jnp.zeros((B, H), jnp.float32)

        def step(carry, x_t):
            h, c = carry
            gates = x_t @ wih_t + h @ whh_t + bias
            i = jax.nn.sigmoid(gates[:, 0 * H:1 * H])
            f = jax.nn.sigmoid(gates[:, 1 * H:2 * H])
            g = jnp.tanh(gates[:, 2 * H:3 * H])
            o = jax.nn.sigmoid(gates[:, 3 * H:4 * H])
            c_new = f * c + i * g
            h_new = o * jnp.tanh(c_new)
            return (h_new, c_new), h_new

        (_, _), h_seq = jax.lax.scan(step, (h0, c0), h_seq)
    last_h = h_seq[-1]
    y = last_h @ params["fc_w_t"] + params["fc_b"]
    return y[:, None, :]


# ----------------------------------------------------------------------------
if __name__ == "__main__":
    # args: d_in=4, d_model=32, n_layers=2, bidirectional=False, d_out=8
    B, S, D_IN, D_MODEL, N_LAYERS, D_OUT = 2, 8, 4, 32, 2, 8

    key = jax.random.PRNGKey(0)
    key, kx = jax.random.split(key)
    x = jax.random.normal(kx, (B, S, D_IN), jnp.float32)

    params = init_params(key, D_IN, D_MODEL, N_LAYERS, D_OUT)

    out = jax.block_until_ready(lstm_model_forward(x, params))

    ref = lstm_model_reference(x, params)
    np.testing.assert_allclose(np.asarray(out), np.asarray(ref), rtol=1e-5, atol=1e-5)

    print("KERNEL_OK")
</pallas_src>

<mosaic_0001>
module attributes {stable_mosaic.version = 11 : i64} {
  func.func @_fused_lstm_fc_kernel(%arg0: memref<16x4xf32, #tpu.memory_space<vmem>>, %arg1: memref<4x128xf32, #tpu.memory_space<vmem>>, %arg2: memref<32x128xf32, #tpu.memory_space<vmem>>, %arg3: memref<1x128xf32, #tpu.memory_space<vmem>>, %arg4: memref<32x128xf32, #tpu.memory_space<vmem>>, %arg5: memref<32x128xf32, #tpu.memory_space<vmem>>, %arg6: memref<1x128xf32, #tpu.memory_space<vmem>>, %arg7: memref<32x8xf32, #tpu.memory_space<vmem>>, %arg8: memref<1x8xf32, #tpu.memory_space<vmem>>, %arg9: memref<2x8xf32, #tpu.memory_space<vmem>>) attributes {dimension_semantics = [], scalar_prefetch = 0 : i64, scratch_operands = 0 : i64, tpu.core_type = #tpu.core_type<tc>} {
    %0 = tpu.iota {dimensions = array<i32: 1>} : vector<2x128xi32>
    %c64_i32 = arith.constant 64 : i32
    %1 = vector.broadcast %c64_i32 : i32 to vector<2x128xi32>
    %2 = arith.cmpi sge, %0, %1 : vector<2x128xi32>
    %c96_i32 = arith.constant 96 : i32
    %3 = vector.broadcast %c96_i32 : i32 to vector<2x128xi32>
    %4 = arith.cmpi slt, %0, %3 : vector<2x128xi32>
    %5 = arith.andi %2, %4 : vector<2x128xi1>
    %c0 = arith.constant 0 : index
    %c0_0 = arith.constant 0 : index
    %6 = vector.load %arg0[%c0, %c0_0] : memref<16x4xf32, #tpu.memory_space<vmem>>, vector<16x4xf32>
    %c0_1 = arith.constant 0 : index
    %c0_2 = arith.constant 0 : index
    %7 = vector.load %arg1[%c0_1, %c0_2] : memref<4x128xf32, #tpu.memory_space<vmem>>, vector<4x128xf32>
    %cst = arith.constant dense<0.000000e+00> : vector<16x128xf32>
    %8 = tpu.matmul %6, %7, %cst {dimension_numbers = #tpu.dot_dimension_numbers<[1], [0], [0], [1], [0, 0, 1, 1], [], []>} : vector<16x4xf32>, vector<4x128xf32>, vector<16x128xf32> -> vector<16x128xf32>
    %c0_3 = arith.constant 0 : index
    %c0_4 = arith.constant 0 : index
    %9 = vector.load %arg3[%c0_3, %c0_4] : memref<1x128xf32, #tpu.memory_space<vmem>>, vector<1x128xf32>
    %10 = vector.broadcast %9 : vector<1x128xf32> to vector<16x128xf32>
    %11 = arith.addf %8, %10 : vector<16x128xf32>
    %c0_5 = arith.constant 0 : index
    %c0_6 = arith.constant 0 : index
    %12 = vector.load %arg2[%c0_5, %c0_6] : memref<32x128xf32, #tpu.memory_space<vmem>>, vector<32x128xf32>
    %cst_7 = arith.constant 0.000000e+00 : f32
    %13 = vector.broadcast %cst_7 : f32 to vector<2x32xf32>
    %cst_8 = arith.constant 0.000000e+00 : f32
    %14 = vector.broadcast %cst_8 : f32 to vector<2x32xf32>
    %15 = vector.extract_strided_slice %11 {offsets = [0, 0], sizes = [2, 128], strides = [1, 1]} : vector<16x128xf32> to vector<2x128xf32>
    %cst_9 = arith.constant dense<0.000000e+00> : vector<2x128xf32>
    %16 = tpu.matmul %13, %12, %cst_9 {dimension_numbers = #tpu.dot_dimension_numbers<[1], [0], [0], [1], [0, 0, 1, 1], [], []>} : vector<2x32xf32>, vector<32x128xf32>, vector<2x128xf32> -> vector<2x128xf32>
    %17 = arith.addf %15, %16 : vector<2x128xf32>
    %18 = arith.negf %17 : vector<2x128xf32>
    %19 = math.exp %18 : vector<2x128xf32>
    %cst_10 = arith.constant 1.000000e+00 : f32
    %20 = vector.broadcast %cst_10 : f32 to vector<2x128xf32>
    %21 = arith.addf %20, %19 : vector<2x128xf32>
    %22 = arith.divf %20, %21 : vector<2x128xf32>
    %23 = math.tanh %17 : vector<2x128xf32>
    %24 = arith.select %5, %23, %22 : vector<2x128xi1>, vector<2x128xf32>
    %25 = vector.extract_strided_slice %24 {offsets = [0, 0], sizes = [2, 32], strides = [1, 1]} : vector<2x128xf32> to vector<2x32xf32>
    %26 = vector.extract_strided_slice %24 {offsets = [0, 32], sizes = [2, 32], strides = [1, 1]} : vector<2x128xf32> to vector<2x32xf32>
    %27 = vector.extract_strided_slice %24 {offsets = [0, 64], sizes = [2, 32], strides = [1, 1]} : vector<2x128xf32> to vector<2x32xf32>
    %28 = vector.extract_strided_slice %24 {offsets = [0, 96], sizes = [2, 32], strides = [1, 1]} : vector<2x128xf32> to vector<2x32xf32>
    %29 = arith.mulf %26, %14 : vector<2x32xf32>
    %30 = arith.mulf %25, %27 : vector<2x32xf32>
    %31 = arith.addf %29, %30 : vector<2x32xf32>
    %32 = math.tanh %31 : vector<2x32xf32>
    %33 = arith.mulf %28, %32 : vector<2x32xf32>
    %34 = vector.extract_strided_slice %11 {offsets = [2, 0], sizes = [2, 128], strides = [1, 1]} : vector<16x128xf32> to vector<2x128xf32>
    %cst_11 = arith.constant dense<0.000000e+00> : vector<2x128xf32>
    %35 = tpu.matmul %33, %12, %cst_11 {dimension_numbers = #tpu.dot_dimension_numbers<[1], [0], [0], [1], [0, 0, 1, 1], [], []>} : vector<2x32xf32>, vector<32x128xf32>, vector<2x128xf32> -> vector<2x128xf32>
    %36 = arith.addf %34, %35 : vector<2x128xf32>
    %37 = arith.negf %36 : vector<2x128xf32>
    %38 = math.exp %37 : vector<2x128xf32>
    %cst_12 = arith.constant 1.000000e+00 : f32
    %39 = vector.broadcast %cst_12 : f32 to vector<2x128xf32>
    %40 = arith.addf %39, %38 : vector<2x128xf32>
    %41 = arith.divf %39, %40 : vector<2x128xf32>
    %42 = math.tanh %36 : vector<2x128xf32>
    %43 = arith.select %5, %42, %41 : vector<2x128xi1>, vector<2x128xf32>
    %44 = vector.extract_strided_slice %43 {offsets = [0, 0], sizes = [2, 32], strides = [1, 1]} : vector<2x128xf32> to vector<2x32xf32>
    %45 = vector.extract_strided_slice %43 {offsets = [0, 32], sizes = [2, 32], strides = [1, 1]} : vector<2x128xf32> to vector<2x32xf32>
    %46 = vector.extract_strided_slice %43 {offsets = [0, 64], sizes = [2, 32], strides = [1, 1]} : vector<2x128xf32> to vector<2x32xf32>
    %47 = vector.extract_strided_slice %43 {offsets = [0, 96], sizes = [2, 32], strides = [1, 1]} : vector<2x128xf32> to vector<2x32xf32>
    %48 = arith.mulf %45, %31 : vector<2x32xf32>
    %49 = arith.mulf %44, %46 : vector<2x32xf32>
    %50 = arith.addf %48, %49 : vector<2x32xf32>
    %51 = math.tanh %50 : vector<2x32xf32>
    %52 = arith.mulf %47, %51 : vector<2x32xf32>
    %53 = vector.extract_strided_slice %11 {offsets = [4, 0], sizes = [2, 128], strides = [1, 1]} : vector<16x128xf32> to vector<2x128xf32>
    %cst_13 = arith.constant dense<0.000000e+00> : vector<2x128xf32>
    %54 = tpu.matmul %52, %12, %cst_13 {dimension_numbers = #tpu.dot_dimension_numbers<[1], [0], [0], [1], [0, 0, 1, 1], [], []>} : vector<2x32xf32>, vector<32x128xf32>, vector<2x128xf32> -> vector<2x128xf32>
    %55 = arith.addf %53, %54 : vector<2x128xf32>
    %56 = arith.negf %55 : vector<2x128xf32>
    %57 = math.exp %56 : vector<2x128xf32>
    %cst_14 = arith.constant 1.000000e+00 : f32
    %58 = vector.broadcast %cst_14 : f32 to vector<2x128xf32>
    %59 = arith.addf %58, %57 : vector<2x128xf32>
    %60 = arith.divf %58, %59 : vector<2x128xf32>
    %61 = math.tanh %55 : vector<2x128xf32>
    %62 = arith.select %5, %61, %60 : vector<2x128xi1>, vector<2x128xf32>
    %63 = vector.extract_strided_slice %62 {offsets = [0, 0], sizes = [2, 32], strides = [1, 1]} : vector<2x128xf32> to vector<2x32xf32>
    %64 = vector.extract_strided_slice %62 {offsets = [0, 32], sizes = [2, 32], strides = [1, 1]} : vector<2x128xf32> to vector<2x32xf32>
    %65 = vector.extract_strided_slice %62 {offsets = [0, 64], sizes = [2, 32], strides = [1, 1]} : vector<2x128xf32> to vector<2x32xf32>
    %66 = vector.extract_strided_slice %62 {offsets = [0, 96], sizes = [2, 32], strides = [1, 1]} : vector<2x128xf32> to vector<2x32xf32>
    %67 = arith.mulf %64, %50 : vector<2x32xf32>
    %68 = arith.mulf %63, %65 : vector<2x32xf32>
    %69 = arith.addf %67, %68 : vector<2x32xf32>
    %70 = math.tanh %69 : vector<2x32xf32>
    %71 = arith.mulf %66, %70 : vector<2x32xf32>
    %72 = vector.extract_strided_slice %11 {offsets = [6, 0], sizes = [2, 128], strides = [1, 1]} : vector<16x128xf32> to vector<2x128xf32>
    %cst_15 = arith.constant dense<0.000000e+00> : vector<2x128xf32>
    %73 = tpu.matmul %71, %12, %cst_15 {dimension_numbers = #tpu.dot_dimension_numbers<[1], [0], [0], [1], [0, 0, 1, 1], [], []>} : vector<2x32xf32>, vector<32x128xf32>, vector<2x128xf32> -> vector<2x128xf32>
    %74 = arith.addf %72, %73 : vector<2x128xf32>
    %75 = arith.negf %74 : vector<2x128xf32>
    %76 = math.exp %75 : vector<2x128xf32>
    %cst_16 = arith.constant 1.000000e+00 : f32
    %77 = vector.broadcast %cst_16 : f32 to vector<2x128xf32>
    %78 = arith.addf %77, %76 : vector<2x128xf32>
    %79 = arith.divf %77, %78 : vector<2x128xf32>
    %80 = math.tanh %74 : vector<2x128xf32>
    %81 = arith.select %5, %80, %79 : vector<2x128xi1>, vector<2x128xf32>
    %82 = vector.extract_strided_slice %81 {offsets = [0, 0], sizes = [2, 32], strides = [1, 1]} : vector<2x128xf32> to vector<2x32xf32>
    %83 = vector.extract_strided_slice %81 {offsets = [0, 32], sizes = [2, 32], strides = [1, 1]} : vector<2x128xf32> to vector<2x32xf32>
    %84 = vector.extract_strided_slice %81 {offsets = [0, 64], sizes = [2, 32], strides = [1, 1]} : vector<2x128xf32> to vector<2x32xf32>
    %85 = vector.extract_strided_slice %81 {offsets = [0, 96], sizes = [2, 32], strides = [1, 1]} : vector<2x128xf32> to vector<2x32xf32>
    %86 = arith.mulf %83, %69 : vector<2x32xf32>
    %87 = arith.mulf %82, %84 : vector<2x32xf32>
    %88 = arith.addf %86, %87 : vector<2x32xf32>
    %89 = math.tanh %88 : vector<2x32xf32>
    %90 = arith.mulf %85, %89 : vector<2x32xf32>
    %91 = vector.extract_strided_slice %11 {offsets = [8, 0], sizes = [2, 128], strides = [1, 1]} : vector<16x128xf32> to vector<2x128xf32>
    %cst_17 = arith.constant dense<0.000000e+00> : vector<2x128xf32>
    %92 = tpu.matmul %90, %12, %cst_17 {dimension_numbers = #tpu.dot_dimension_numbers<[1], [0], [0], [1], [0, 0, 1, 1], [], []>} : vector<2x32xf32>, vector<32x128xf32>, vector<2x128xf32> -> vector<2x128xf32>
    %93 = arith.addf %91, %92 : vector<2x128xf32>
    %94 = arith.negf %93 : vector<2x128xf32>
    %95 = math.exp %94 : vector<2x128xf32>
    %cst_18 = arith.constant 1.000000e+00 : f32
    %96 = vector.broadcast %cst_18 : f32 to vector<2x128xf32>
    %97 = arith.addf %96, %95 : vector<2x128xf32>
    %98 = arith.divf %96, %97 : vector<2x128xf32>
    %99 = math.tanh %93 : vector<2x128xf32>
    %100 = arith.select %5, %99, %98 : vector<2x128xi1>, vector<2x128xf32>
    %101 = vector.extract_strided_slice %100 {offsets = [0, 0], sizes = [2, 32], strides = [1, 1]} : vector<2x128xf32> to vector<2x32xf32>
    %102 = vector.extract_strided_slice %100 {offsets = [0, 32], sizes = [2, 32], strides = [1, 1]} : vector<2x128xf32> to vector<2x32xf32>
    %103 = vector.extract_strided_slice %100 {offsets = [0, 64], sizes = [2, 32], strides = [1, 1]} : vector<2x128xf32> to vector<2x32xf32>
    %104 = vector.extract_strided_slice %100 {offsets = [0, 96], sizes = [2, 32], strides = [1, 1]} : vector<2x128xf32> to vector<2x32xf32>
    %105 = arith.mulf %102, %88 : vector<2x32xf32>
    %106 = arith.mulf %101, %103 : vector<2x32xf32>
    %107 = arith.addf %105, %106 : vector<2x32xf32>
    %108 = math.tanh %107 : vector<2x32xf32>
    %109 = arith.mulf %104, %108 : vector<2x32xf32>
    %110 = vector.extract_strided_slice %11 {offsets = [10, 0], sizes = [2, 128], strides = [1, 1]} : vector<16x128xf32> to vector<2x128xf32>
    %cst_19 = arith.constant dense<0.000000e+00> : vector<2x128xf32>
    %111 = tpu.matmul %109, %12, %cst_19 {dimension_numbers = #tpu.dot_dimension_numbers<[1], [0], [0], [1], [0, 0, 1, 1], [], []>} : vector<2x32xf32>, vector<32x128xf32>, vector<2x128xf32> -> vector<2x128xf32>
    %112 = arith.addf %110, %111 : vector<2x128xf32>
    %113 = arith.negf %112 : vector<2x128xf32>
    %114 = math.exp %113 : vector<2x128xf32>
    %cst_20 = arith.constant 1.000000e+00 : f32
    %115 = vector.broadcast %cst_20 : f32 to vector<2x128xf32>
    %116 = arith.addf %115, %114 : vector<2x128xf32>
    %117 = arith.divf %115, %116 : vector<2x128xf32>
    %118 = math.tanh %112 : vector<2x128xf32>
    %119 = arith.select %5, %118, %117 : vector<2x128xi1>, vector<2x128xf32>
    %120 = vector.extract_strided_slice %119 {offsets = [0, 0], sizes = [2, 32], strides = [1, 1]} : vector<2x128xf32> to vector<2x32xf32>
    %121 = vector.extract_strided_slice %119 {offsets = [0, 32], sizes = [2, 32], strides = [1, 1]} : vector<2x128xf32> to vector<2x32xf32>
    %122 = vector.extract_strided_slice %119 {offsets = [0, 64], sizes = [2, 32], strides = [1, 1]} : vector<2x128xf32> to vector<2x32xf32>
    %123 = vector.extract_strided_slice %119 {offsets = [0, 96], sizes = [2, 32], strides = [1, 1]} : vector<2x128xf32> to vector<2x32xf32>
    %124 = arith.mulf %121, %107 : vector<2x32xf32>
    %125 = arith.mulf %120, %122 : vector<2x32xf32>
    %126 = arith.addf %124, %125 : vector<2x32xf32>
    %127 = math.tanh %126 : vector<2x32xf32>
    %128 = arith.mulf %123, %127 : vector<2x32xf32>
    %129 = vector.extract_strided_slice %11 {offsets = [12, 0], sizes = [2, 128], strides = [1, 1]} : vector<16x128xf32> to vector<2x128xf32>
    %cst_21 = arith.constant dense<0.000000e+00> : vector<2x128xf32>
    %130 = tpu.matmul %128, %12, %cst_21 {dimension_numbers = #tpu.dot_dimension_numbers<[1], [0], [0], [1], [0, 0, 1, 1], [], []>} : vector<2x32xf32>, vector<32x128xf32>, vector<2x128xf32> -> vector<2x128xf32>
    %131 = arith.addf %129, %130 : vector<2x128xf32>
    %132 = arith.negf %131 : vector<2x128xf32>
    %133 = math.exp %132 : vector<2x128xf32>
    %cst_22 = arith.constant 1.000000e+00 : f32
    %134 = vector.broadcast %cst_22 : f32 to vector<2x128xf32>
    %135 = arith.addf %134, %133 : vector<2x128xf32>
    %136 = arith.divf %134, %135 : vector<2x128xf32>
    %137 = math.tanh %131 : vector<2x128xf32>
    %138 = arith.select %5, %137, %136 : vector<2x128xi1>, vector<2x128xf32>
    %139 = vector.extract_strided_slice %138 {offsets = [0, 0], sizes = [2, 32], strides = [1, 1]} : vector<2x128xf32> to vector<2x32xf32>
    %140 = vector.extract_strided_slice %138 {offsets = [0, 32], sizes = [2, 32], strides = [1, 1]} : vector<2x128xf32> to vector<2x32xf32>
    %141 = vector.extract_strided_slice %138 {offsets = [0, 64], sizes = [2, 32], strides = [1, 1]} : vector<2x128xf32> to vector<2x32xf32>
    %142 = vector.extract_strided_slice %138 {offsets = [0, 96], sizes = [2, 32], strides = [1, 1]} : vector<2x128xf32> to vector<2x32xf32>
    %143 = arith.mulf %140, %126 : vector<2x32xf32>
    %144 = arith.mulf %139, %141 : vector<2x32xf32>
    %145 = arith.addf %143, %144 : vector<2x32xf32>
    %146 = math.tanh %145 : vector<2x32xf32>
    %147 = arith.mulf %142, %146 : vector<2x32xf32>
    %148 = vector.extract_strided_slice %11 {offsets = [14, 0], sizes = [2, 128], strides = [1, 1]} : vector<16x128xf32> to vector<2x128xf32>
    %cst_23 = arith.constant dense<0.000000e+00> : vector<2x128xf32>
    %149 = tpu.matmul %147, %12, %cst_23 {dimension_numbers = #tpu.dot_dimension_numbers<[1], [0], [0], [1], [0, 0, 1, 1], [], []>} : vector<2x32xf32>, vector<32x128xf32>, vector<2x128xf32> -> vector<2x128xf32>
    %150 = arith.addf %148, %149 : vector<2x128xf32>
    %151 = arith.negf %150 : vector<2x128xf32>
    %152 = math.exp %151 : vector<2x128xf32>
    %cst_24 = arith.constant 1.000000e+00 : f32
    %153 = vector.broadcast %cst_24 : f32 to vector<2x128xf32>
    %154 = arith.addf %153, %152 : vector<2x128xf32>
    %155 = arith.divf %153, %154 : vector<2x128xf32>
    %156 = math.tanh %150 : vector<2x128xf32>
    %157 = arith.select %5, %156, %155 : vector<2x128xi1>, vector<2x128xf32>
    %158 = vector.extract_strided_slice %157 {offsets = [0, 0], sizes = [2, 32], strides = [1, 1]} : vector<2x128xf32> to vector<2x32xf32>
    %159 = vector.extract_strided_slice %157 {offsets = [0, 32], sizes = [2, 32], strides = [1, 1]} : vector<2x128xf32> to vector<2x32xf32>
    %160 = vector.extract_strided_slice %157 {offsets = [0, 64], sizes = [2, 32], strides = [1, 1]} : vector<2x128xf32> to vector<2x32xf32>
    %161 = vector.extract_strided_slice %157 {offsets = [0, 96], sizes = [2, 32], strides = [1, 1]} : vector<2x128xf32> to vector<2x32xf32>
    %162 = arith.mulf %159, %145 : vector<2x32xf32>
    %163 = arith.mulf %158, %160 : vector<2x32xf32>
    %164 = arith.addf %162, %163 : vector<2x32xf32>
    %165 = math.tanh %164 : vector<2x32xf32>
    %166 = arith.mulf %161, %165 : vector<2x32xf32>
    %167 = tpu.concatenate %33, %52, %71, %90, %109, %128, %147, %166 in 0 : vector<2x32xf32>, vector<2x32xf32>, vector<2x32xf32>, vector<2x32xf32>, vector<2x32xf32>, vector<2x32xf32>, vector<2x32xf32>, vector<2x32xf32> -> vector<16x32xf32>
    %c0_25 = arith.constant 0 : index
    %c0_26 = arith.constant 0 : index
    %168 = vector.load %arg4[%c0_25, %c0_26] : memref<32x128xf32, #tpu.memory_space<vmem>>, vector<32x128xf32>
    %cst_27 = arith.constant dense<0.000000e+00> : vector<16x128xf32>
    %169 = tpu.matmul %167, %168, %cst_27 {dimension_numbers = #tpu.dot_dimension_numbers<[1], [0], [0], [1], [0, 0, 1, 1], [], []>} : vector<16x32xf32>, vector<32x128xf32>, vector<16x128xf32> -> vector<16x128xf32>
    %c0_28 = arith.constant 0 : index
    %c0_29 = arith.constant 0 : index
    %170 = vector.load %arg6[%c0_28, %c0_29] : memref<1x128xf32, #tpu.memory_space<vmem>>, vector<1x128xf32>
    %171 = vector.broadcast %170 : vector<1x128xf32> to vector<16x128xf32>
    %172 = arith.addf %169, %171 : vector<16x128xf32>
    %c0_30 = arith.constant 0 : index
    %c0_31 = arith.constant 0 : index
    %173 = vector.load %arg5[%c0_30, %c0_31] : memref<32x128xf32, #tpu.memory_space<vmem>>, vector<32x128xf32>
    %cst_32 = arith.constant 0.000000e+00 : f32
    %174 = vector.broadcast %cst_32 : f32 to vector<2x32xf32>
    %cst_33 = arith.constant 0.000000e+00 : f32
    %175 = vector.broadcast %cst_33 : f32 to vector<2x32xf32>
    %176 = vector.extract_strided_slice %172 {offsets = [0, 0], sizes = [2, 128], strides = [1, 1]} : vector<16x128xf32> to vector<2x128xf32>
    %cst_34 = arith.constant dense<0.000000e+00> : vector<2x128xf32>
    %177 = tpu.matmul %174, %173, %cst_34 {dimension_numbers = #tpu.dot_dimension_numbers<[1], [0], [0], [1], [0, 0, 1, 1], [], []>} : vector<2x32xf32>, vector<32x128xf32>, vector<2x128xf32> -> vector<2x128xf32>
    %178 = arith.addf %176, %177 : vector<2x128xf32>
    %179 = arith.negf %178 : vector<2x128xf32>
    %180 = math.exp %179 : vector<2x128xf32>
    %cst_35 = arith.constant 1.000000e+00 : f32
    %181 = vector.broadcast %cst_35 : f32 to vector<2x128xf32>
    %182 = arith.addf %181, %180 : vector<2x128xf32>
    %183 = arith.divf %181, %182 : vector<2x128xf32>
    %184 = math.tanh %178 : vector<2x128xf32>
    %185 = arith.select %5, %184, %183 : vector<2x128xi1>, vector<2x128xf32>
    %186 = vector.extract_strided_slice %185 {offsets = [0, 0], sizes = [2, 32], strides = [1, 1]} : vector<2x128xf32> to vector<2x32xf32>
    %187 = vector.extract_strided_slice %185 {offsets = [0, 32], sizes = [2, 32], strides = [1, 1]} : vector<2x128xf32> to vector<2x32xf32>
    %188 = vector.extract_strided_slice %185 {offsets = [0, 64], sizes = [2, 32], strides = [1, 1]} : vector<2x128xf32> to vector<2x32xf32>
    %189 = vector.extract_strided_slice %185 {offsets = [0, 96], sizes = [2, 32], strides = [1, 1]} : vector<2x128xf32> to vector<2x32xf32>
    %190 = arith.mulf %187, %175 : vector<2x32xf32>
    %191 = arith.mulf %186, %188 : vector<2x32xf32>
    %192 = arith.addf %190, %191 : vector<2x32xf32>
    %193 = math.tanh %192 : vector<2x32xf32>
    %194 = arith.mulf %189, %193 : vector<2x32xf32>
    %195 = vector.extract_strided_slice %172 {offsets = [2, 0], sizes = [2, 128], strides = [1, 1]} : vector<16x128xf32> to vector<2x128xf32>
    %cst_36 = arith.constant dense<0.000000e+00> : vector<2x128xf32>
    %196 = tpu.matmul %194, %173, %cst_36 {dimension_numbers = #tpu.dot_dimension_numbers<[1], [0], [0], [1], [0, 0, 1, 1], [], []>} : vector<2x32xf32>, vector<32x128xf32>, vector<2x128xf32> -> vector<2x128xf32>
    %197 = arith.addf %195, %196 : vector<2x128xf32>
    %198 = arith.negf %197 : vector<2x128xf32>
    %199 = math.exp %198 : vector<2x128xf32>
    %cst_37 = arith.constant 1.000000e+00 : f32
    %200 = vector.broadcast %cst_37 : f32 to vector<2x128xf32>
    %201 = arith.addf %200, %199 : vector<2x128xf32>
    %202 = arith.divf %200, %201 : vector<2x128xf32>
    %203 = math.tanh %197 : vector<2x128xf32>
    %204 = arith.select %5, %203, %202 : vector<2x128xi1>, vector<2x128xf32>
    %205 = vector.extract_strided_slice %204 {offsets = [0, 0], sizes = [2, 32], strides = [1, 1]} : vector<2x128xf32> to vector<2x32xf32>
    %206 = vector.extract_strided_slice %204 {offsets = [0, 32], sizes = [2, 32], strides = [1, 1]} : vector<2x128xf32> to vector<2x32xf32>
    %207 = vector.extract_strided_slice %204 {offsets = [0, 64], sizes = [2, 32], strides = [1, 1]} : vector<2x128xf32> to vector<2x32xf32>
    %208 = vector.extract_strided_slice %204 {offsets = [0, 96], sizes = [2, 32], strides = [1, 1]} : vector<2x128xf32> to vector<2x32xf32>
    %209 = arith.mulf %206, %192 : vector<2x32xf32>
    %210 = arith.mulf %205, %207 : vector<2x32xf32>
    %211 = arith.addf %209, %210 : vector<2x32xf32>
    %212 = math.tanh %211 : vector<2x32xf32>
    %213 = arith.mulf %208, %212 : vector<2x32xf32>
    %214 = vector.extract_strided_slice %172 {offsets = [4, 0], sizes = [2, 128], strides = [1, 1]} : vector<16x128xf32> to vector<2x128xf32>
    %cst_38 = arith.constant dense<0.000000e+00> : vector<2x128xf32>
    %215 = tpu.matmul %213, %173, %cst_38 {dimension_numbers = #tpu.dot_dimension_numbers<[1], [0], [0], [1], [0, 0, 1, 1], [], []>} : vector<2x32xf32>, vector<32x128xf32>, vector<2x128xf32> -> vector<2x128xf32>
    %216 = arith.addf %214, %215 : vector<2x128xf32>
    %217 = arith.negf %216 : vector<2x128xf32>
    %218 = math.exp %217 : vector<2x128xf32>
    %cst_39 = arith.constant 1.000000e+00 : f32
    %219 = vector.broadcast %cst_39 : f32 to vector<2x128xf32>
    %220 = arith.addf %219, %218 : vector<2x128xf32>
    %221 = arith.divf %219, %220 : vector<2x128xf32>
    %222 = math.tanh %216 : vector<2x128xf32>
    %223 = arith.select %5, %222, %221 : vector<2x128xi1>, vector<2x128xf32>
    %224 = vector.extract_strided_slice %223 {offsets = [0, 0], sizes = [2, 32], strides = [1, 1]} : vector<2x128xf32> to vector<2x32xf32>
    %225 = vector.extract_strided_slice %223 {offsets = [0, 32], sizes = [2, 32], strides = [1, 1]} : vector<2x128xf32> to vector<2x32xf32>
    %226 = vector.extract_strided_slice %223 {offsets = [0, 64], sizes = [2, 32], strides = [1, 1]} : vector<2x128xf32> to vector<2x32xf32>
    %227 = vector.extract_strided_slice %223 {offsets = [0, 96], sizes = [2, 32], strides = [1, 1]} : vector<2x128xf32> to vector<2x32xf32>
    %228 = arith.mulf %225, %211 : vector<2x32xf32>
    %229 = arith.mulf %224, %226 : vector<2x32xf32>
    %230 = arith.addf %228, %229 : vector<2x32xf32>
    %231 = math.tanh %230 : vector<2x32xf32>
    %232 = arith.mulf %227, %231 : vector<2x32xf32>
    %233 = vector.extract_strided_slice %172 {offsets = [6, 0], sizes = [2, 128], strides = [1, 1]} : vector<16x128xf32> to vector<2x128xf32>
    %cst_40 = arith.constant dense<0.000000e+00> : vector<2x128xf32>
    %234 = tpu.matmul %232, %173, %cst_40 {dimension_numbers = #tpu.dot_dimension_numbers<[1], [0], [0], [1], [0, 0, 1, 1], [], []>} : vector<2x32xf32>, vector<32x128xf32>, vector<2x128xf32> -> vector<2x128xf32>
    %235 = arith.addf %233, %234 : vector<2x128xf32>
    %236 = arith.negf %235 : vector<2x128xf32>
    %237 = math.exp %236 : vector<2x128xf32>
    %cst_41 = arith.constant 1.000000e+00 : f32
    %238 = vector.broadcast %cst_41 : f32 to vector<2x128xf32>
    %239 = arith.addf %238, %237 : vector<2x128xf32>
    %240 = arith.divf %238, %239 : vector<2x128xf32>
    %241 = math.tanh %235 : vector<2x128xf32>
    %242 = arith.select %5, %241, %240 : vector<2x128xi1>, vector<2x128xf32>
    %243 = vector.extract_strided_slice %242 {offsets = [0, 0], sizes = [2, 32], strides = [1, 1]} : vector<2x128xf32> to vector<2x32xf32>
    %244 = vector.extract_strided_slice %242 {offsets = [0, 32], sizes = [2, 32], strides = [1, 1]} : vector<2x128xf32> to vector<2x32xf32>
    %245 = vector.extract_strided_slice %242 {offsets = [0, 64], sizes = [2, 32], strides = [1, 1]} : vector<2x128xf32> to vector<2x32xf32>
    %246 = vector.extract_strided_slice %242 {offsets = [0, 96], sizes = [2, 32], strides = [1, 1]} : vector<2x128xf32> to vector<2x32xf32>
    %247 = arith.mulf %244, %230 : vector<2x32xf32>
    %248 = arith.mulf %243, %245 : vector<2x32xf32>
    %249 = arith.addf %247, %248 : vector<2x32xf32>
    %250 = math.tanh %249 : vector<2x32xf32>
    %251 = arith.mulf %246, %250 : vector<2x32xf32>
    %252 = vector.extract_strided_slice %172 {offsets = [8, 0], sizes = [2, 128], strides = [1, 1]} : vector<16x128xf32> to vector<2x128xf32>
    %cst_42 = arith.constant dense<0.000000e+00> : vector<2x128xf32>
    %253 = tpu.matmul %251, %173, %cst_42 {dimension_numbers = #tpu.dot_dimension_numbers<[1], [0], [0], [1], [0, 0, 1, 1], [], []>} : vector<2x32xf32>, vector<32x128xf32>, vector<2x128xf32> -> vector<2x128xf32>
    %254 = arith.addf %252, %253 : vector<2x128xf32>
    %255 = arith.negf %254 : vector<2x128xf32>
    %256 = math.exp %255 : vector<2x128xf32>
    %cst_43 = arith.constant 1.000000e+00 : f32
    %257 = vector.broadcast %cst_43 : f32 to vector<2x128xf32>
    %258 = arith.addf %257, %256 : vector<2x128xf32>
    %259 = arith.divf %257, %258 : vector<2x128xf32>
    %260 = math.tanh %254 : vector<2x128xf32>
    %261 = arith.select %5, %260, %259 : vector<2x128xi1>, vector<2x128xf32>
    %262 = vector.extract_strided_slice %261 {offsets = [0, 0], sizes = [2, 32], strides = [1, 1]} : vector<2x128xf32> to vector<2x32xf32>
    %263 = vector.extract_strided_slice %261 {offsets = [0, 32], sizes = [2, 32], strides = [1, 1]} : vector<2x128xf32> to vector<2x32xf32>
    %264 = vector.extract_strided_slice %261 {offsets = [0, 64], sizes = [2, 32], strides = [1, 1]} : vector<2x128xf32> to vector<2x32xf32>
    %265 = vector.extract_strided_slice %261 {offsets = [0, 96], sizes = [2, 32], strides = [1, 1]} : vector<2x128xf32> to vector<2x32xf32>
    %266 = arith.mulf %263, %249 : vector<2x32xf32>
    %267 = arith.mulf %262, %264 : vector<2x32xf32>
    %268 = arith.addf %266, %267 : vector<2x32xf32>
    %269 = math.tanh %268 : vector<2x32xf32>
    %270 = arith.mulf %265, %269 : vector<2x32xf32>
    %271 = vector.extract_strided_slice %172 {offsets = [10, 0], sizes = [2, 128], strides = [1, 1]} : vector<16x128xf32> to vector<2x128xf32>
    %cst_44 = arith.constant dense<0.000000e+00> : vector<2x128xf32>
    %272 = tpu.matmul %270, %173, %cst_44 {dimension_numbers = #tpu.dot_dimension_numbers<[1], [0], [0], [1], [0, 0, 1, 1], [], []>} : vector<2x32xf32>, vector<32x128xf32>, vector<2x128xf32> -> vector<2x128xf32>
    %273 = arith.addf %271, %272 : vector<2x128xf32>
    %274 = arith.negf %273 : vector<2x128xf32>
    %275 = math.exp %274 : vector<2x128xf32>
    %cst_45 = arith.constant 1.000000e+00 : f32
    %276 = vector.broadcast %cst_45 : f32 to vector<2x128xf32>
    %277 = arith.addf %276, %275 : vector<2x128xf32>
    %278 = arith.divf %276, %277 : vector<2x128xf32>
    %279 = math.tanh %273 : vector<2x128xf32>
    %280 = arith.select %5, %279, %278 : vector<2x128xi1>, vector<2x128xf32>
    %281 = vector.extract_strided_slice %280 {offsets = [0, 0], sizes = [2, 32], strides = [1, 1]} : vector<2x128xf32> to vector<2x32xf32>
    %282 = vector.extract_strided_slice %280 {offsets = [0, 32], sizes = [2, 32], strides = [1, 1]} : vector<2x128xf32> to vector<2x32xf32>
    %283 = vector.extract_strided_slice %280 {offsets = [0, 64], sizes = [2, 32], strides = [1, 1]} : vector<2x128xf32> to vector<2x32xf32>
    %284 = vector.extract_strided_slice %280 {offsets = [0, 96], sizes = [2, 32], strides = [1, 1]} : vector<2x128xf32> to vector<2x32xf32>
    %285 = arith.mulf %282, %268 : vector<2x32xf32>
    %286 = arith.mulf %281, %283 : vector<2x32xf32>
    %287 = arith.addf %285, %286 : vector<2x32xf32>
    %288 = math.tanh %287 : vector<2x32xf32>
    %289 = arith.mulf %284, %288 : vector<2x32xf32>
    %290 = vector.extract_strided_slice %172 {offsets = [12, 0], sizes = [2, 128], strides = [1, 1]} : vector<16x128xf32> to vector<2x128xf32>
    %cst_46 = arith.constant dense<0.000000e+00> : vector<2x128xf32>
    %291 = tpu.matmul %289, %173, %cst_46 {dimension_numbers = #tpu.dot_dimension_numbers<[1], [0], [0], [1], [0, 0, 1, 1], [], []>} : vector<2x32xf32>, vector<32x128xf32>, vector<2x128xf32> -> vector<2x128xf32>
    %292 = arith.addf %290, %291 : vector<2x128xf32>
    %293 = arith.negf %292 : vector<2x128xf32>
    %294 = math.exp %293 : vector<2x128xf32>
    %cst_47 = arith.constant 1.000000e+00 : f32
    %295 = vector.broadcast %cst_47 : f32 to vector<2x128xf32>
    %296 = arith.addf %295, %294 : vector<2x128xf32>
    %297 = arith.divf %295, %296 : vector<2x128xf32>
    %298 = math.tanh %292 : vector<2x128xf32>
    %299 = arith.select %5, %298, %297 : vector<2x128xi1>, vector<2x128xf32>
    %300 = vector.extract_strided_slice %299 {offsets = [0, 0], sizes = [2, 32], strides = [1, 1]} : vector<2x128xf32> to vector<2x32xf32>
    %301 = vector.extract_strided_slice %299 {offsets = [0, 32], sizes = [2, 32], strides = [1, 1]} : vector<2x128xf32> to vector<2x32xf32>
    %302 = vector.extract_strided_slice %299 {offsets = [0, 64], sizes = [2, 32], strides = [1, 1]} : vector<2x128xf32> to vector<2x32xf32>
    %303 = vector.extract_strided_slice %299 {offsets = [0, 96], sizes = [2, 32], strides = [1, 1]} : vector<2x128xf32> to vector<2x32xf32>
    %304 = arith.mulf %301, %287 : vector<2x32xf32>
    %305 = arith.mulf %300, %302 : vector<2x32xf32>
    %306 = arith.addf %304, %305 : vector<2x32xf32>
    %307 = math.tanh %306 : vector<2x32xf32>
    %308 = arith.mulf %303, %307 : vector<2x32xf32>
    %309 = vector.extract_strided_slice %172 {offsets = [14, 0], sizes = [2, 128], strides = [1, 1]} : vector<16x128xf32> to vector<2x128xf32>
    %cst_48 = arith.constant dense<0.000000e+00> : vector<2x128xf32>
    %310 = tpu.matmul %308, %173, %cst_48 {dimension_numbers = #tpu.dot_dimension_numbers<[1], [0], [0], [1], [0, 0, 1, 1], [], []>} : vector<2x32xf32>, vector<32x128xf32>, vector<2x128xf32> -> vector<2x128xf32>
    %311 = arith.addf %309, %310 : vector<2x128xf32>
    %312 = arith.negf %311 : vector<2x128xf32>
    %313 = math.exp %312 : vector<2x128xf32>
    %cst_49 = arith.constant 1.000000e+00 : f32
    %314 = vector.broadcast %cst_49 : f32 to vector<2x128xf32>
    %315 = arith.addf %314, %313 : vector<2x128xf32>
    %316 = arith.divf %314, %315 : vector<2x128xf32>
    %317 = math.tanh %311 : vector<2x128xf32>
    %318 = arith.select %5, %317, %316 : vector<2x128xi1>, vector<2x128xf32>
    %319 = vector.extract_strided_slice %318 {offsets = [0, 0], sizes = [2, 32], strides = [1, 1]} : vector<2x128xf32> to vector<2x32xf32>
    %320 = vector.extract_strided_slice %318 {offsets = [0, 32], sizes = [2, 32], strides = [1, 1]} : vector<2x128xf32> to vector<2x32xf32>
    %321 = vector.extract_strided_slice %318 {offsets = [0, 64], sizes = [2, 32], strides = [1, 1]} : vector<2x128xf32> to vector<2x32xf32>
    %322 = vector.extract_strided_slice %318 {offsets = [0, 96], sizes = [2, 32], strides = [1, 1]} : vector<2x128xf32> to vector<2x32xf32>
    %323 = arith.mulf %320, %306 : vector<2x32xf32>
    %324 = arith.mulf %319, %321 : vector<2x32xf32>
    %325 = arith.addf %323, %324 : vector<2x32xf32>
    %326 = math.tanh %325 : vector<2x32xf32>
    %327 = arith.mulf %322, %326 : vector<2x32xf32>
    %c0_50 = arith.constant 0 : index
    %c0_51 = arith.constant 0 : index
    %328 = vector.load %arg7[%c0_50, %c0_51] : memref<32x8xf32, #tpu.memory_space<vmem>>, vector<32x8xf32>
    %cst_52 = arith.constant dense<0.000000e+00> : vector<2x8xf32>
    %329 = tpu.matmul %327, %328, %cst_52 {dimension_numbers = #tpu.dot_dimension_numbers<[1], [0], [0], [1], [0, 0, 1, 1], [], []>} : vector<2x32xf32>, vector<32x8xf32>, vector<2x8xf32> -> vector<2x8xf32>
    %c0_53 = arith.constant 0 : index
    %c0_54 = arith.constant 0 : index
    %330 = vector.load %arg8[%c0_53, %c0_54] : memref<1x8xf32, #tpu.memory_space<vmem>>, vector<1x8xf32>
    %331 = vector.broadcast %330 : vector<1x8xf32> to vector<2x8xf32>
    %332 = arith.addf %329, %331 : vector<2x8xf32>
    %c0_55 = arith.constant 0 : index
    %c0_56 = arith.constant 0 : index
    %333 = vector.load %arg9[%c0_55, %c0_56] : memref<2x8xf32, #tpu.memory_space<vmem>>, vector<2x8xf32>
    tpu.vector_store %arg9[%c0_55, %c0_56], %332 {strides = array<i32>} : memref<2x8xf32, #tpu.memory_space<vmem>>, vector<2x8xf32>,
    return
  }
}

</mosaic_0001>

<llo_original>
// kernel: lstm_model_forward.1
$region0: #{lstm_model_forward.1}
  #allocation0 [shape = 'u32[]', space=smem, size = 0x4, offset = 0x4, fixed_abs, tag = 'smem constant byte address 0x4 - core index']
  #allocation1 [shape = 'u32[144,128]{1,0:T(1,128)}', space=vmem, size = 0x12000, scoped, tag = 'internal scratch']
  %s0 = inlined_call_operand.vmem [shape: f32[16,4], index: 0, kind: input, shape index: {}]
  %s1 = inlined_call_operand.hbm [shape: f32[4,128], index: 1, kind: input, shape index: {}]
  %s2 = inlined_call_operand.vmem [shape: f32[32,128], index: 2, kind: input, shape index: {}]
  %s3 = inlined_call_operand.vmem [shape: f32[1,128], index: 3, kind: input, shape index: {}]
  %s4 = inlined_call_operand.vmem [shape: f32[32,128], index: 4, kind: input, shape index: {}]
  %s5 = inlined_call_operand.vmem [shape: f32[32,128], index: 5, kind: input, shape index: {}]
  %s6 = inlined_call_operand.vmem [shape: f32[1,128], index: 6, kind: input, shape index: {}]
  %s7 = inlined_call_operand.vmem [shape: f32[32,8], index: 7, kind: input, shape index: {}]
  %s8 = inlined_call_operand.hbm [shape: f32[1,8], index: 8, kind: input, shape index: {}]
  %s9 = inlined_call_operand.hbm [shape: f32[2,8], index: 9, kind: output, shape index: {}]
  %s10 = sld [smem:[#allocation0]]
  $region54: #{lstm_model_forward.1} parent=0
    _
  %s12 = ssub.s32 1, %s10
  %s13 = scalar_select 0, %s12, %s10
  $region1: #{lstm_model_forward.1} parent=0
    #allocation2 [shape = 'u8[2048]{0}', space=vmem, size = 0x800, scoped, tag = 'input window, operand 1, single buffered']
    #allocation3 [shape = 's32[1]{0}', space=sflag, size = 0x4, scoped, tag = 'scoped memory for lstm_model_forward.1']
    #allocation4 [shape = 's32[1]{0}', space=sflag, size = 0x4, scoped, tag = 'scoped memory for lstm_model_forward.1']
    #allocation5 [shape = 'u8[512]{0}', space=vmem, size = 0x400, scoped, tag = 'input window, operand 8, single buffered']
    #allocation6 [shape = 's32[1]{0}', space=sflag, size = 0x4, scoped, tag = 'scoped memory for lstm_model_forward.1']
    #allocation7 [shape = 'u8[1024]{0}', space=vmem, size = 0x400, scoped, tag = 'output window, operand 0, single buffered']
    %14 = vsyncpa [#allocation3], 0
    %15 = vsyncpa [#allocation6], 0
    %16 = vsyncpa [#allocation4], 0
    // Predicated region
    $region2: #{lstm_model_forward.1} parent=1 // pred_check
      _
    $region3: #{lstm_model_forward.1} parent=1 // pred_check_branch
      %18 = sbr.rel (0) target = $region5
    $region4: #{lstm_model_forward.1} parent=1 // pred_region
      _
    $region5: #{lstm_model_forward.1} parent=1 // pred_fallthru
      _
    // Predicated region
    $region6: #{lstm_model_forward.1} parent=1 // pred_check
      _
    $region7: #{lstm_model_forward.1} parent=1 // pred_check_branch
      %20 = sbr.rel (0) target = $region9
    $region8: #{lstm_model_forward.1} parent=1 // pred_region
      %s22 = ssub.s32 64, 64
      %23 = vsyncadd [#allocation3], %s22
      %s25 = sshll.u32 [#allocation2], 4
      %s26 = int_to_ptr.vmem [resolvable:$true] %s25
      %28 = dma.hbm_to_vmem [thread:$0]  %s1, 64, %s26, [#allocation3]
    $region9: #{lstm_model_forward.1} parent=1 // pred_fallthru
      _
    // Predicated region
    $region10: #{lstm_model_forward.1} parent=1 // pred_check
      _
    $region11: #{lstm_model_forward.1} parent=1 // pred_check_branch
      %30 = sbr.rel (0) target = $region13
    $region12: #{lstm_model_forward.1} parent=1 // pred_region
      _
    $region13: #{lstm_model_forward.1} parent=1 // pred_fallthru
      _
    // Predicated region
    $region14: #{lstm_model_forward.1} parent=1 // pred_check
      _
    $region15: #{lstm_model_forward.1} parent=1 // pred_check_branch
      %32 = sbr.rel (0) target = $region17
    $region16: #{lstm_model_forward.1} parent=1 // pred_region
      _
    $region17: #{lstm_model_forward.1} parent=1 // pred_fallthru
      _
    // Predicated region
    $region18: #{lstm_model_forward.1} parent=1 // pred_check
      _
    $region19: #{lstm_model_forward.1} parent=1 // pred_check_branch
      %34 = sbr.rel (0) target = $region21
    $region20: #{lstm_model_forward.1} parent=1 // pred_region
      _
    $region21: #{lstm_model_forward.1} parent=1 // pred_fallthru
      _
    // Predicated region
    $region22: #{lstm_model_forward.1} parent=1 // pred_check
      _
    $region23: #{lstm_model_forward.1} parent=1 // pred_check_branch
      %36 = sbr.rel (0) target = $region25
    $region24: #{lstm_model_forward.1} parent=1 // pred_region
      _
    $region25: #{lstm_model_forward.1} parent=1 // pred_fallthru
      _
    // Predicated region
    $region26: #{lstm_model_forward.1} parent=1 // pred_check
      _
    $region27: #{lstm_model_forward.1} parent=1 // pred_check_branch
      %38 = sbr.rel (0) target = $region29
    $region28: #{lstm_model_forward.1} parent=1 // pred_region
      _
    $region29: #{lstm_model_forward.1} parent=1 // pred_fallthru
      _
    // Predicated region
    $region30: #{lstm_model_forward.1} parent=1 // pred_check
      _
    $region31: #{lstm_model_forward.1} parent=1 // pred_check_branch
      %40 = sbr.rel (0) target = $region33
    $region32: #{lstm_model_forward.1} parent=1 // pred_region
      _
    $region33: #{lstm_model_forward.1} parent=1 // pred_fallthru
      _
    // Predicated region
    $region34: #{lstm_model_forward.1} parent=1 // pred_check
      _
    $region35: #{lstm_model_forward.1} parent=1 // pred_check_branch
      %42 = sbr.rel (0) target = $region37
    $region36: #{lstm_model_forward.1} parent=1 // pred_region
      %s44 = ssub.s32 16, 16
      %45 = vsyncadd [#allocation6], %s44
      %s47 = sshll.u32 [#allocation5], 4
      %s48 = int_to_ptr.vmem [resolvable:$true] %s47
      %50 = dma.hbm_to_vmem [thread:$0]  %s8, 16, %s48, [#allocation6]
    $region37: #{lstm_model_forward.1} parent=1 // pred_fallthru
      _
    // Predicated region
    $region38: #{lstm_model_forward.1} parent=1 // pred_check
      _
    $region39: #{lstm_model_forward.1} parent=1 // pred_check_branch
      %52 = sbr.rel (0) target = $region41
    $region40: #{lstm_model_forward.1} parent=1 // pred_region
      %53 = dma.done [#allocation3], 64
    $region41: #{lstm_model_forward.1} parent=1 // pred_fallthru
      _
    // Predicated region
    $region42: #{lstm_model_forward.1} parent=1 // pred_check
      _
    $region43: #{lstm_model_forward.1} parent=1 // pred_check_branch
      %55 = sbr.rel (0) target = $region45
    $region44: #{lstm_model_forward.1} parent=1 // pred_region
      %56 = dma.done [#allocation6], 16
    $region45: #{lstm_model_forward.1} parent=1 // pred_fallthru
      _
    %v57 = vlaneseq
    %v58 = vand.u32 %v57, 127
    %vm59 = vcmp.ge.s32.totalorder %v58, 64
    %vm60 = vcmp.lt.s32.totalorder %v58, 96
    %vm61 = vmand %vm59, %vm60
    %v62 = vld [vmem:[%s0] sm:$0xff]
    %v63 = vld [vmem:[%s0 + $0x8] sm:$0xff]
    %v64 = vld [vmem:[#allocation2] sm:$0xf]
    %v65 = vld [vmem:[%s3] sm:$0x1]
    %v67 = vlaneseq
    %v68 = vshrl.u32 %v67, 7
    %v69 = vsub.s32 0, %v68
    %v70 = vrot.slane %v65, %v69
    %vm72 = vcmask 31744
    %v74 = vsel %vm72, %v62, 0
    %v77 = vsel %vm72, %v63, 0
    %vm79 = vcmask 1043456
    %v81 = vsel %vm79, %v64, 0
    %83 = vmatprep.subr.mxu0 0.0
    %84 = vmatpush1.msra.mxu0 %v81
    %85 = vmatprep.subr.mxu0 0.0
    %86 = vmatpush1.msra.mxu0 0.0
    %87 = vmatprep.subr.mxu0 0.0
    %88 = vmatpush1.msra.mxu0 0.0
    %89 = vmatprep.subr.mxu0 0.0
    %90 = vmatpush1.msra.mxu0 0.0
    %91 = vmatprep.subr.mxu0 0.0
    %92 = vmatpush1.msra.mxu0 0.0
    %93 = vmatprep.subr.mxu0 0.0
    %94 = vmatpush1.msra.mxu0 0.0
    %95 = vmatprep.subr.mxu0 0.0
    %96 = vmatpush1.msra.mxu0 0.0
    %97 = vmatprep.subr.mxu0 0.0
    %98 = vmatpush1.msra.mxu0 0.0
    %99 = vmatprep.subr.mxu0 0.0
    %100 = vmatpush1.msra.mxu0 0.0
    %101 = vmatprep.subr.mxu0 0.0
    %102 = vmatpush1.msra.mxu0 0.0
    %103 = vmatprep.subr.mxu0 0.0
    %104 = vmatpush1.msra.mxu0 0.0
    %105 = vmatprep.subr.mxu0 0.0
    %106 = vmatpush1.msra.mxu0 0.0
    %107 = vmatprep.subr.mxu0 0.0
    %108 = vmatpush1.msra.mxu0 0.0
    %109 = vmatprep.subr.mxu0 0.0
    %110 = vmatpush1.msra.mxu0 0.0
    %111 = vmatprep.subr.mxu0 0.0
    %112 = vmatpush1.msra.mxu0 0.0
    %113 = vmatprep.subr.mxu0 0.0
    %114 = vmatpush1.msra.mxu0 0.0
    %115 = vmatprep.subr.mxu0 0.0
    %116 = vmatpush1.msra.mxu0 0.0
    %117 = vmatprep.subr.mxu0 0.0
    %118 = vmatpush1.msra.mxu0 0.0
    %119 = vmatprep.subr.mxu0 0.0
    %120 = vmatpush1.msra.mxu0 0.0
    %121 = vmatprep.subr.mxu0 0.0
    %122 = vmatpush1.msra.mxu0 0.0
    %123 = vmatprep.subr.mxu0 0.0
    %124 = vmatpush1.msra.mxu0 0.0
    %125 = vmatprep.subr.mxu0 0.0
    %126 = vmatpush1.msra.mxu0 0.0
    %127 = vmatprep.subr.mxu0 0.0
    %128 = vmatpush1.msra.mxu0 0.0
    %129 = vmatprep.subr.mxu0 0.0
    %130 = vmatpush1.msra.mxu0 0.0
    %131 = vmatprep.subr.mxu0 0.0
    %132 = vmatpush1.msra.mxu0 0.0
    %133 = vmatprep.subr.mxu0 0.0
    %134 = vmatpush1.msra.mxu0 0.0
    %135 = vmatprep.subr.mxu0 0.0
    %136 = vmatpush1.msra.mxu0 0.0
    %137 = vmatprep.subr.mxu0 0.0
    %138 = vmatpush1.msra.mxu0 0.0
    %139 = vmatprep.subr.mxu0 0.0
    %140 = vmatpush1.msra.mxu0 0.0
    %141 = vmatprep.subr.mxu0 0.0
    %142 = vmatpush1.msra.mxu0 0.0
    %143 = vmatprep.subr.mxu0 0.0
    %144 = vmatpush1.msra.mxu0 0.0
    %145 = vmatprep.subr.mxu0 0.0
    %146 = vmatpush1.msra.mxu0 0.0
    %147 = vmatprep.mubr.f32.mxu0 0.0
    %148 = vmatmul.mubr.f32.gmra.mrb[0].mxu0 %v74
    %v149 = vpop.f32.mrb[0].mxu0
    %v150 = vadd.f32 %v70, %v149
    %v151 = vpop.f32.mrb[0].mxu0
    %152 = vmatprep.mubr.f32.mxu0 0.0
    %153 = vmatmul.mubr.f32.gmra.mrb[0].mxu0 %v77
    %v154 = vpop.f32.mrb[0].mxu0
    %v155 = vadd.f32 %v70, %v154
    %v156 = vpop.f32.mrb[0].mxu0
    %157 = vdwg.mxu0
    %v158 = vld [vmem:[%s2] sm:$0xff]
    %v159 = vld [vmem:[%s2 + $0x8] sm:$0xff]
    %v160 = vld [vmem:[%s2 + $0x10] sm:$0xff]
    %v161 = vld [vmem:[%s2 + $0x18] sm:$0xff]
    %vm162 = vcmask 261120
    %v164 = vsel %vm162, 0.0, 0
    %166 = vmatprep.subr.mxu0 0.0
    %167 = vmatpush1.msra.mxu0 %v158
    %168 = vmatprep.subr.mxu0 0.0
    %169 = vmatpush1.msra.mxu0 %v159
    %170 = vmatprep.subr.mxu0 0.0
    %171 = vmatpush1.msra.mxu0 %v160
    %172 = vmatprep.subr.mxu0 0.0
    %173 = vmatpush1.msra.mxu0 %v161
    %174 = vmatprep.subr.mxu0 0.0
    %175 = vmatpush1.msra.mxu0 0.0
    %176 = vmatprep.subr.mxu0 0.0
    %177 = vmatpush1.msra.mxu0 0.0
    %178 = vmatprep.subr.mxu0 0.0
    %179 = vmatpush1.msra.mxu0 0.0
    %180 = vmatprep.subr.mxu0 0.0
    %181 = vmatpush1.msra.mxu0 0.0
    %182 = vmatprep.subr.mxu0 0.0
    %183 = vmatpush1.msra.mxu0 0.0
    %184 = vmatprep.subr.mxu0 0.0
    %185 = vmatpush1.msra.mxu0 0.0
    %186 = vmatprep.subr.mxu0 0.0
    %187 = vmatpush1.msra.mxu0 0.0
    %188 = vmatprep.subr.mxu0 0.0
    %189 = vmatpush1.msra.mxu0 0.0
    %190 = vmatprep.subr.mxu0 0.0
    %191 = vmatpush1.msra.mxu0 0.0
    %192 = vmatprep.subr.mxu0 0.0
    %193 = vmatpush1.msra.mxu0 0.0
    %194 = vmatprep.subr.mxu0 0.0
    %195 = vmatpush1.msra.mxu0 0.0
    %196 = vmatprep.subr.mxu0 0.0
    %197 = vmatpush1.msra.mxu0 0.0
    %198 = vmatprep.subr.mxu0 0.0
    %199 = vmatpush1.msra.mxu0 0.0
    %200 = vmatprep.subr.mxu0 0.0
    %201 = vmatpush1.msra.mxu0 0.0
    %202 = vmatprep.subr.mxu0 0.0
    %203 = vmatpush1.msra.mxu0 0.0
    %204 = vmatprep.subr.mxu0 0.0
    %205 = vmatpush1.msra.mxu0 0.0
    %206 = vmatprep.subr.mxu0 0.0
    %207 = vmatpush1.msra.mxu0 0.0
    %208 = vmatprep.subr.mxu0 0.0
    %209 = vmatpush1.msra.mxu0 0.0
    %210 = vmatprep.subr.mxu0 0.0
    %211 = vmatpush1.msra.mxu0 0.0
    %212 = vmatprep.subr.mxu0 0.0
    %213 = vmatpush1.msra.mxu0 0.0
    %214 = vmatprep.subr.mxu0 0.0
    %215 = vmatpush1.msra.mxu0 0.0
    %216 = vmatprep.subr.mxu0 0.0
    %217 = vmatpush1.msra.mxu0 0.0
    %218 = vmatprep.subr.mxu0 0.0
    %219 = vmatpush1.msra.mxu0 0.0
    %220 = vmatprep.subr.mxu0 0.0
    %221 = vmatpush1.msra.mxu0 0.0
    %222 = vmatprep.subr.mxu0 0.0
    %223 = vmatpush1.msra.mxu0 0.0
    %224 = vmatprep.subr.mxu0 0.0
    %225 = vmatpush1.msra.mxu0 0.0
    %226 = vmatprep.subr.mxu0 0.0
    %227 = vmatpush1.msra.mxu0 0.0
    %228 = vmatprep.subr.mxu0 0.0
    %229 = vmatpush1.msra.mxu0 0.0
    %230 = vmatprep.mubr.f32.mxu0 0.0
    %231 = vmatmul.mubr.f32.gmra.mrb[0].mxu0 %v164
    %v232 = vpop.f32.mrb[0].mxu0
    %v233 = vadd.f32 0.0, %v232
    %v234 = vpop.f32.mrb[0].mxu0
    %235 = vdwg.mxu0
    %v236 = vadd.f32 %v150, %v233
    %v237 = vxor.u32 %v236, 2147483648
    %v238 = vmul.f32 %v237, 1.442695
    %v239 = vpow.pop %v238
    %v240 = vadd.f32 %v239, 1.0
    %v241 = vrcp.pop %v240
    %v242 = vmul.f32 1.0, %v241
    %v243 = vtanh.pop %v236
    %v244 = vsel %vm61, %v243, %v242
    %v245 = vmul.f32 %v244, 0.0
    %247 = vrot.lane.b32.xlu0 %v244, 64
    %v248 = vpop.permute.xlu0 %247
    %v250 = vmul.f32 %v244, %v248
    %252 = vrot.lane.b32.xlu0 %v250, 32
    %v253 = vpop.permute.xlu0 %252
    %v255 = vadd.f32 %v245, %v253
    %v256 = vtanh.pop %v255
    %258 = vrot.lane.b32.xlu0 %v256, 64
    %v259 = vpop.permute.xlu0 %258
    %v261 = vmul.f32 %v244, %v259
    %263 = vrot.lane.b32.xlu0 %v261, 32
    %v264 = vpop.permute.xlu0 %263
    %v265 = vsel %vm162, %v264, 0
    %267 = vmatprep.subr.mxu0 0.0
    %268 = vmatpush1.msra.mxu0 %v158
    %269 = vmatprep.subr.mxu0 0.0
    %270 = vmatpush1.msra.mxu0 %v159
    %271 = vmatprep.subr.mxu0 0.0
    %272 = vmatpush1.msra.mxu0 %v160
    %273 = vmatprep.subr.mxu0 0.0
    %274 = vmatpush1.msra.mxu0 %v161
    %275 = vmatprep.subr.mxu0 0.0
    %276 = vmatpush1.msra.mxu0 0.0
    %277 = vmatprep.subr.mxu0 0.0
    %278 = vmatpush1.msra.mxu0 0.0
    %279 = vmatprep.subr.mxu0 0.0
    %280 = vmatpush1.msra.mxu0 0.0
    %281 = vmatprep.subr.mxu0 0.0
    %282 = vmatpush1.msra.mxu0 0.0
    %283 = vmatprep.subr.mxu0 0.0
    %284 = vmatpush1.msra.mxu0 0.0
    %285 = vmatprep.subr.mxu0 0.0
    %286 = vmatpush1.msra.mxu0 0.0
    %287 = vmatprep.subr.mxu0 0.0
    %288 = vmatpush1.msra.mxu0 0.0
    %289 = vmatprep.subr.mxu0 0.0
    %290 = vmatpush1.msra.mxu0 0.0
    %291 = vmatprep.subr.mxu0 0.0
    %292 = vmatpush1.msra.mxu0 0.0
    %293 = vmatprep.subr.mxu0 0.0
    %294 = vmatpush1.msra.mxu0 0.0
    %295 = vmatprep.subr.mxu0 0.0
    %296 = vmatpush1.msra.mxu0 0.0
    %297 = vmatprep.subr.mxu0 0.0
    %298 = vmatpush1.msra.mxu0 0.0
    %299 = vmatprep.subr.mxu0 0.0
    %300 = vmatpush1.msra.mxu0 0.0
    %301 = vmatprep.subr.mxu0 0.0
    %302 = vmatpush1.msra.mxu0 0.0
    %303 = vmatprep.subr.mxu0 0.0
    %304 = vmatpush1.msra.mxu0 0.0
    %305 = vmatprep.subr.mxu0 0.0
    %306 = vmatpush1.msra.mxu0 0.0
    %307 = vmatprep.subr.mxu0 0.0
    %308 = vmatpush1.msra.mxu0 0.0
    %309 = vmatprep.subr.mxu0 0.0
    %310 = vmatpush1.msra.mxu0 0.0
    %311 = vmatprep.subr.mxu0 0.0
    %312 = vmatpush1.msra.mxu0 0.0
    %313 = vmatprep.subr.mxu0 0.0
    %314 = vmatpush1.msra.mxu0 0.0
    %315 = vmatprep.subr.mxu0 0.0
    %316 = vmatpush1.msra.mxu0 0.0
    %317 = vmatprep.subr.mxu0 0.0
    %318 = vmatpush1.msra.mxu0 0.0
    %319 = vmatprep.subr.mxu0 0.0
    %320 = vmatpush1.msra.mxu0 0.0
    %321 = vmatprep.subr.mxu0 0.0
    %322 = vmatpush1.msra.mxu0 0.0
    %323 = vmatprep.subr.mxu0 0.0
    %324 = vmatpush1.msra.mxu0 0.0
    %325 = vmatprep.subr.mxu0 0.0
    %326 = vmatpush1.msra.mxu0 0.0
    %327 = vmatprep.subr.mxu0 0.0
    %328 = vmatpush1.msra.mxu0 0.0
    %329 = vmatprep.subr.mxu0 0.0
    %330 = vmatpush1.msra.mxu0 0.0
    %331 = vmatprep.mubr.f32.mxu0 0.0
    %332 = vmatmul.mubr.f32.gmra.mrb[0].mxu0 %v265
    %v333 = vpop.f32.mrb[0].mxu0
    %v334 = vadd.f32 0.0, %v333
    %v335 = vpop.f32.mrb[0].mxu0
    %336 = vdwg.mxu0
    %v338 = vrot.slane %v334, 6
    %v340 = vadd.f32 %v150, %v338
    %v341 = vxor.u32 %v340, 2147483648
    %v342 = vmul.f32 %v341, 1.442695
    %v343 = vpow.pop %v342
    %v344 = vadd.f32 %v343, 1.0
    %v345 = vrcp.pop %v344
    %v346 = vmul.f32 1.0, %v345
    %v347 = vtanh.pop %v340
    %v348 = vsel %vm61, %v347, %v346
    %v350 = vrot.slane %v255, 6
    %v352 = vmul.f32 %v348, %v350
    %354 = vrot.lane.b32.xlu0 %v348, 64
    %v355 = vpop.permute.xlu0 %354
    %v357 = vmul.f32 %v348, %v355
    %359 = vrot.lane.b32.xlu0 %v357, 32
    %v360 = vpop.permute.xlu0 %359
    %v362 = vadd.f32 %v352, %v360
    %v363 = vtanh.pop %v362
    %365 = vrot.lane.b32.xlu0 %v363, 64
    %v366 = vpop.permute.xlu0 %365
    %v368 = vmul.f32 %v348, %v366
    %v370 = vrot.slane %v368, 2
    %371 = vrot.lane.b32.xlu0 %v370, 32
    %v372 = vpop.permute.xlu0 %371
    %v373 = vsel %vm162, %v372, 0
    %375 = vmatprep.subr.mxu0 0.0
    %376 = vmatpush1.msra.mxu0 %v158
    %377 = vmatprep.subr.mxu0 0.0
    %378 = vmatpush1.msra.mxu0 %v159
    %379 = vmatprep.subr.mxu0 0.0
    %380 = vmatpush1.msra.mxu0 %v160
    %381 = vmatprep.subr.mxu0 0.0
    %382 = vmatpush1.msra.mxu0 %v161
    %383 = vmatprep.subr.mxu0 0.0
    %384 = vmatpush1.msra.mxu0 0.0
    %385 = vmatprep.subr.mxu0 0.0
    %386 = vmatpush1.msra.mxu0 0.0
    %387 = vmatprep.subr.mxu0 0.0
    %388 = vmatpush1.msra.mxu0 0.0
    %389 = vmatprep.subr.mxu0 0.0
    %390 = vmatpush1.msra.mxu0 0.0
    %391 = vmatprep.subr.mxu0 0.0
    %392 = vmatpush1.msra.mxu0 0.0
    %393 = vmatprep.subr.mxu0 0.0
    %394 = vmatpush1.msra.mxu0 0.0
    %395 = vmatprep.subr.mxu0 0.0
    %396 = vmatpush1.msra.mxu0 0.0
    %397 = vmatprep.subr.mxu0 0.0
    %398 = vmatpush1.msra.mxu0 0.0
    %399 = vmatprep.subr.mxu0 0.0
    %400 = vmatpush1.msra.mxu0 0.0
    %401 = vmatprep.subr.mxu0 0.0
    %402 = vmatpush1.msra.mxu0 0.0
    %403 = vmatprep.subr.mxu0 0.0
    %404 = vmatpush1.msra.mxu0 0.0
    %405 = vmatprep.subr.mxu0 0.0
    %406 = vmatpush1.msra.mxu0 0.0
    %407 = vmatprep.subr.mxu0 0.0
    %408 = vmatpush1.msra.mxu0 0.0
    %409 = vmatprep.subr.mxu0 0.0
    %410 = vmatpush1.msra.mxu0 0.0
    %411 = vmatprep.subr.mxu0 0.0
    %412 = vmatpush1.msra.mxu0 0.0
    %413 = vmatprep.subr.mxu0 0.0
    %414 = vmatpush1.msra.mxu0 0.0
    %415 = vmatprep.subr.mxu0 0.0
    %416 = vmatpush1.msra.mxu0 0.0
    %417 = vmatprep.subr.mxu0 0.0
    %418 = vmatpush1.msra.mxu0 0.0
    %419 = vmatprep.subr.mxu0 0.0
    %420 = vmatpush1.msra.mxu0 0.0
    %421 = vmatprep.subr.mxu0 0.0
    %422 = vmatpush1.msra.mxu0 0.0
    %423 = vmatprep.subr.mxu0 0.0
    %424 = vmatpush1.msra.mxu0 0.0
    %425 = vmatprep.subr.mxu0 0.0
    %426 = vmatpush1.msra.mxu0 0.0
    %427 = vmatprep.subr.mxu0 0.0
    %428 = vmatpush1.msra.mxu0 0.0
    %429 = vmatprep.subr.mxu0 0.0
    %430 = vmatpush1.msra.mxu0 0.0
    %431 = vmatprep.subr.mxu0 0.0
    %432 = vmatpush1.msra.mxu0 0.0
    %433 = vmatprep.subr.mxu0 0.0
    %434 = vmatpush1.msra.mxu0 0.0
    %435 = vmatprep.subr.mxu0 0.0
    %436 = vmatpush1.msra.mxu0 0.0
    %437 = vmatprep.subr.mxu0 0.0
    %438 = vmatpush1.msra.mxu0 0.0
    %439 = vmatprep.mubr.f32.mxu0 0.0
    %440 = vmatmul.mubr.f32.gmra.mrb[0].mxu0 %v373
    %v441 = vpop.f32.mrb[0].mxu0
    %v442 = vadd.f32 0.0, %v441
    %v443 = vpop.f32.mrb[0].mxu0
    %444 = vdwg.mxu0
    %v446 = vrot.slane %v442, 4
    %v448 = vadd.f32 %v150, %v446
    %v449 = vxor.u32 %v448, 2147483648
    %v450 = vmul.f32 %v449, 1.442695
    %v451 = vpow.pop %v450
    %v452 = vadd.f32 %v451, 1.0
    %v453 = vrcp.pop %v452
    %v454 = vmul.f32 1.0, %v453
    %v455 = vtanh.pop %v448
    %v456 = vsel %vm61, %v455, %v454
    %v458 = vrot.slane %v362, 6
    %v460 = vmul.f32 %v456, %v458
    %462 = vrot.lane.b32.xlu0 %v456, 64
    %v463 = vpop.permute.xlu0 %462
    %v465 = vmul.f32 %v456, %v463
    %467 = vrot.lane.b32.xlu0 %v465, 32
    %v468 = vpop.permute.xlu0 %467
    %v470 = vadd.f32 %v460, %v468
    %v471 = vtanh.pop %v470
    %473 = vrot.lane.b32.xlu0 %v471, 64
    %v474 = vpop.permute.xlu0 %473
    %v476 = vmul.f32 %v456, %v474
    %v478 = vrot.slane %v476, 4
    %479 = vrot.lane.b32.xlu0 %v478, 32
    %v480 = vpop.permute.xlu0 %479
    %v481 = vsel %vm162, %v480, 0
    %483 = vmatprep.subr.mxu0 0.0
    %484 = vmatpush1.msra.mxu0 %v158
    %485 = vmatprep.subr.mxu0 0.0
    %486 = vmatpush1.msra.mxu0 %v159
    %487 = vmatprep.subr.mxu0 0.0
    %488 = vmatpush1.msra.mxu0 %v160
    %489 = vmatprep.subr.mxu0 0.0
    %490 = vmatpush1.msra.mxu0 %v161
    %491 = vmatprep.subr.mxu0 0.0
    %492 = vmatpush1.msra.mxu0 0.0
    %493 = vmatprep.subr.mxu0 0.0
    %494 = vmatpush1.msra.mxu0 0.0
    %495 = vmatprep.subr.mxu0 0.0
    %496 = vmatpush1.msra.mxu0 0.0
    %497 = vmatprep.subr.mxu0 0.0
    %498 = vmatpush1.msra.mxu0 0.0
    %499 = vmatprep.subr.mxu0 0.0
    %500 = vmatpush1.msra.mxu0 0.0
    %501 = vmatprep.subr.mxu0 0.0
    %502 = vmatpush1.msra.mxu0 0.0
    %503 = vmatprep.subr.mxu0 0.0
    %504 = vmatpush1.msra.mxu0 0.0
    %505 = vmatprep.subr.mxu0 0.0
    %506 = vmatpush1.msra.mxu0 0.0
    %507 = vmatprep.subr.mxu0 0.0
    %508 = vmatpush1.msra.mxu0 0.0
    %509 = vmatprep.subr.mxu0 0.0
    %510 = vmatpush1.msra.mxu0 0.0
    %511 = vmatprep.subr.mxu0 0.0
    %512 = vmatpush1.msra.mxu0 0.0
    %513 = vmatprep.subr.mxu0 0.0
    %514 = vmatpush1.msra.mxu0 0.0
    %515 = vmatprep.subr.mxu0 0.0
    %516 = vmatpush1.msra.mxu0 0.0
    %517 = vmatprep.subr.mxu0 0.0
    %518 = vmatpush1.msra.mxu0 0.0
    %519 = vmatprep.subr.mxu0 0.0
    %520 = vmatpush1.msra.mxu0 0.0
    %521 = vmatprep.subr.mxu0 0.0
    %522 = vmatpush1.msra.mxu0 0.0
    %523 = vmatprep.subr.mxu0 0.0
    %524 = vmatpush1.msra.mxu0 0.0
    %525 = vmatprep.subr.mxu0 0.0
    %526 = vmatpush1.msra.mxu0 0.0
    %527 = vmatprep.subr.mxu0 0.0
    %528 = vmatpush1.msra.mxu0 0.0
    %529 = vmatprep.subr.mxu0 0.0
    %530 = vmatpush1.msra.mxu0 0.0
    %531 = vmatprep.subr.mxu0 0.0
    %532 = vmatpush1.msra.mxu0 0.0
    %533 = vmatprep.subr.mxu0 0.0
    %534 = vmatpush1.msra.mxu0 0.0
    %535 = vmatprep.subr.mxu0 0.0
    %536 = vmatpush1.msra.mxu0 0.0
    %537 = vmatprep.subr.mxu0 0.0
    %538 = vmatpush1.msra.mxu0 0.0
    %539 = vmatprep.subr.mxu0 0.0
    %540 = vmatpush1.msra.mxu0 0.0
    %541 = vmatprep.subr.mxu0 0.0
    %542 = vmatpush1.msra.mxu0 0.0
    %543 = vmatprep.subr.mxu0 0.0
    %544 = vmatpush1.msra.mxu0 0.0
    %545 = vmatprep.subr.mxu0 0.0
    %546 = vmatpush1.msra.mxu0 0.0
    %547 = vmatprep.mubr.f32.mxu0 0.0
    %548 = vmatmul.mubr.f32.gmra.mrb[0].mxu0 %v481
    %v549 = vpop.f32.mrb[0].mxu0
    %v550 = vadd.f32 0.0, %v549
    %v551 = vpop.f32.mrb[0].mxu0
    %552 = vdwg.mxu0
    %v554 = vrot.slane %v550, 2
    %v556 = vadd.f32 %v150, %v554
    %v557 = vxor.u32 %v556, 2147483648
    %v558 = vmul.f32 %v557, 1.442695
    %v559 = vpow.pop %v558
    %v560 = vadd.f32 %v559, 1.0
    %v561 = vrcp.pop %v560
    %v562 = vmul.f32 1.0, %v561
    %v563 = vtanh.pop %v556
    %v564 = vsel %vm61, %v563, %v562
    %v566 = vrot.slane %v470, 6
    %v568 = vmul.f32 %v564, %v566
    %570 = vrot.lane.b32.xlu0 %v564, 64
    %v571 = vpop.permute.xlu0 %570
    %v573 = vmul.f32 %v564, %v571
    %575 = vrot.lane.b32.xlu0 %v573, 32
    %v576 = vpop.permute.xlu0 %575
    %v578 = vadd.f32 %v568, %v576
    %v579 = vtanh.pop %v578
    %581 = vrot.lane.b32.xlu0 %v579, 64
    %v582 = vpop.permute.xlu0 %581
    %v584 = vmul.f32 %v564, %v582
    %v586 = vrot.slane %v584, 6
    %587 = vrot.lane.b32.xlu0 %v586, 32
    %v588 = vpop.permute.xlu0 %587
    %v589 = vsel %vm162, %v588, 0
    %591 = vmatprep.subr.mxu0 0.0
    %592 = vmatpush1.msra.mxu0 %v158
    %593 = vmatprep.subr.mxu0 0.0
    %594 = vmatpush1.msra.mxu0 %v159
    %595 = vmatprep.subr.mxu0 0.0
    %596 = vmatpush1.msra.mxu0 %v160
    %597 = vmatprep.subr.mxu0 0.0
    %598 = vmatpush1.msra.mxu0 %v161
    %599 = vmatprep.subr.mxu0 0.0
    %600 = vmatpush1.msra.mxu0 0.0
    %601 = vmatprep.subr.mxu0 0.0
    %602 = vmatpush1.msra.mxu0 0.0
    %603 = vmatprep.subr.mxu0 0.0
    %604 = vmatpush1.msra.mxu0 0.0
    %605 = vmatprep.subr.mxu0 0.0
    %606 = vmatpush1.msra.mxu0 0.0
    %607 = vmatprep.subr.mxu0 0.0
    %608 = vmatpush1.msra.mxu0 0.0
    %609 = vmatprep.subr.mxu0 0.0
    %610 = vmatpush1.msra.mxu0 0.0
    %611 = vmatprep.subr.mxu0 0.0
    %612 = vmatpush1.msra.mxu0 0.0
    %613 = vmatprep.subr.mxu0 0.0
    %614 = vmatpush1.msra.mxu0 0.0
    %615 = vmatprep.subr.mxu0 0.0
    %616 = vmatpush1.msra.mxu0 0.0
    %617 = vmatprep.subr.mxu0 0.0
    %618 = vmatpush1.msra.mxu0 0.0
    %619 = vmatprep.subr.mxu0 0.0
    %620 = vmatpush1.msra.mxu0 0.0
    %621 = vmatprep.subr.mxu0 0.0
    %622 = vmatpush1.msra.mxu0 0.0
    %623 = vmatprep.subr.mxu0 0.0
    %624 = vmatpush1.msra.mxu0 0.0
    %625 = vmatprep.subr.mxu0 0.0
    %626 = vmatpush1.msra.mxu0 0.0
    %627 = vmatprep.subr.mxu0 0.0
    %628 = vmatpush1.msra.mxu0 0.0
    %629 = vmatprep.subr.mxu0 0.0
    %630 = vmatpush1.msra.mxu0 0.0
    %631 = vmatprep.subr.mxu0 0.0
    %632 = vmatpush1.msra.mxu0 0.0
    %633 = vmatprep.subr.mxu0 0.0
    %634 = vmatpush1.msra.mxu0 0.0
    %635 = vmatprep.subr.mxu0 0.0
    %636 = vmatpush1.msra.mxu0 0.0
    %637 = vmatprep.subr.mxu0 0.0
    %638 = vmatpush1.msra.mxu0 0.0
    %639 = vmatprep.subr.mxu0 0.0
    %640 = vmatpush1.msra.mxu0 0.0
    %641 = vmatprep.subr.mxu0 0.0
    %642 = vmatpush1.msra.mxu0 0.0
    %643 = vmatprep.subr.mxu0 0.0
    %644 = vmatpush1.msra.mxu0 0.0
    %645 = vmatprep.subr.mxu0 0.0
    %646 = vmatpush1.msra.mxu0 0.0
    %647 = vmatprep.subr.mxu0 0.0
    %648 = vmatpush1.msra.mxu0 0.0
    %649 = vmatprep.subr.mxu0 0.0
    %650 = vmatpush1.msra.mxu0 0.0
    %651 = vmatprep.subr.mxu0 0.0
    %652 = vmatpush1.msra.mxu0 0.0
    %653 = vmatprep.subr.mxu0 0.0
    %654 = vmatpush1.msra.mxu0 0.0
    %655 = vmatprep.mubr.f32.mxu0 0.0
    %656 = vmatmul.mubr.f32.gmra.mrb[0].mxu0 %v589
    %v657 = vpop.f32.mrb[0].mxu0
    %v658 = vadd.f32 0.0, %v657
    %v659 = vpop.f32.mrb[0].mxu0
    %660 = vdwg.mxu0
    %v661 = vadd.f32 %v155, %v658
    %v662 = vxor.u32 %v661, 2147483648
    %v663 = vmul.f32 %v662, 1.442695
    %v664 = vpow.pop %v663
    %v665 = vadd.f32 %v664, 1.0
    %v666 = vrcp.pop %v665
    %v667 = vmul.f32 1.0, %v666
    %v668 = vtanh.pop %v661
    %v669 = vsel %vm61, %v668, %v667
    %v671 = vrot.slane %v578, 6
    %v673 = vmul.f32 %v669, %v671
    %675 = vrot.lane.b32.xlu0 %v669, 64
    %v676 = vpop.permute.xlu0 %675
    %v678 = vmul.f32 %v669, %v676
    %680 = vrot.lane.b32.xlu0 %v678, 32
    %v681 = vpop.permute.xlu0 %680
    %v683 = vadd.f32 %v673, %v681
    %v684 = vtanh.pop %v683
    %686 = vrot.lane.b32.xlu0 %v684, 64
    %v687 = vpop.permute.xlu0 %686
    %v689 = vmul.f32 %v669, %v687
    %691 = vrot.lane.b32.xlu0 %v689, 32
    %v692 = vpop.permute.xlu0 %691
    %v693 = vsel %vm162, %v692, 0
    %695 = vmatprep.subr.mxu0 0.0
    %696 = vmatpush1.msra.mxu0 %v158
    %697 = vmatprep.subr.mxu0 0.0
    %698 = vmatpush1.msra.mxu0 %v159
    %699 = vmatprep.subr.mxu0 0.0
    %700 = vmatpush1.msra.mxu0 %v160
    %701 = vmatprep.subr.mxu0 0.0
    %702 = vmatpush1.msra.mxu0 %v161
    %703 = vmatprep.subr.mxu0 0.0
    %704 = vmatpush1.msra.mxu0 0.0
    %705 = vmatprep.subr.mxu0 0.0
    %706 = vmatpush1.msra.mxu0 0.0
    %707 = vmatprep.subr.mxu0 0.0
    %708 = vmatpush1.msra.mxu0 0.0
    %709 = vmatprep.subr.mxu0 0.0
    %710 = vmatpush1.msra.mxu0 0.0
    %711 = vmatprep.subr.mxu0 0.0
    %712 = vmatpush1.msra.mxu0 0.0
    %713 = vmatprep.subr.mxu0 0.0
    %714 = vmatpush1.msra.mxu0 0.0
    %715 = vmatprep.subr.mxu0 0.0
    %716 = vmatpush1.msra.mxu0 0.0
    %717 = vmatprep.subr.mxu0 0.0
    %718 = vmatpush1.msra.mxu0 0.0
    %719 = vmatprep.subr.mxu0 0.0
    %720 = vmatpush1.msra.mxu0 0.0
    %721 = vmatprep.subr.mxu0 0.0
    %722 = vmatpush1.msra.mxu0 0.0
    %723 = vmatprep.subr.mxu0 0.0
    %724 = vmatpush1.msra.mxu0 0.0
    %725 = vmatprep.subr.mxu0 0.0
    %726 = vmatpush1.msra.mxu0 0.0
    %727 = vmatprep.subr.mxu0 0.0
    %728 = vmatpush1.msra.mxu0 0.0
    %729 = vmatprep.subr.mxu0 0.0
    %730 = vmatpush1.msra.mxu0 0.0
    %731 = vmatprep.subr.mxu0 0.0
    %732 = vmatpush1.msra.mxu0 0.0
    %733 = vmatprep.subr.mxu0 0.0
    %734 = vmatpush1.msra.mxu0 0.0
    %735 = vmatprep.subr.mxu0 0.0
    %736 = vmatpush1.msra.mxu0 0.0
    %737 = vmatprep.subr.mxu0 0.0
    %738 = vmatpush1.msra.mxu0 0.0
    %739 = vmatprep.subr.mxu0 0.0
    %740 = vmatpush1.msra.mxu0 0.0
    %741 = vmatprep.subr.mxu0 0.0
    %742 = vmatpush1.msra.mxu0 0.0
    %743 = vmatprep.subr.mxu0 0.0
    %744 = vmatpush1.msra.mxu0 0.0
    %745 = vmatprep.subr.mxu0 0.0
    %746 = vmatpush1.msra.mxu0 0.0
    %747 = vmatprep.subr.mxu0 0.0
    %748 = vmatpush1.msra.mxu0 0.0
    %749 = vmatprep.subr.mxu0 0.0
    %750 = vmatpush1.msra.mxu0 0.0
    %751 = vmatprep.subr.mxu0 0.0
    %752 = vmatpush1.msra.mxu0 0.0
    %753 = vmatprep.subr.mxu0 0.0
    %754 = vmatpush1.msra.mxu0 0.0
    %755 = vmatprep.subr.mxu0 0.0
    %756 = vmatpush1.msra.mxu0 0.0
    %757 = vmatprep.subr.mxu0 0.0
    %758 = vmatpush1.msra.mxu0 0.0
    %759 = vmatprep.mubr.f32.mxu0 0.0
    %760 = vmatmul.mubr.f32.gmra.mrb[0].mxu0 %v693
    %v761 = vpop.f32.mrb[0].mxu0
    %v762 = vadd.f32 0.0, %v761
    %v763 = vpop.f32.mrb[0].mxu0
    %764 = vdwg.mxu0
    %v766 = vrot.slane %v762, 6
    %v768 = vadd.f32 %v155, %v766
    %v769 = vxor.u32 %v768, 2147483648
    %v770 = vmul.f32 %v769, 1.442695
    %v771 = vpow.pop %v770
    %v772 = vadd.f32 %v771, 1.0
    %v773 = vrcp.pop %v772
    %v774 = vmul.f32 1.0, %v773
    %v775 = vtanh.pop %v768
    %v776 = vsel %vm61, %v775, %v774
    %v778 = vrot.slane %v683, 6
    %v780 = vmul.f32 %v776, %v778
    %782 = vrot.lane.b32.xlu0 %v776, 64
    %v783 = vpop.permute.xlu0 %782
    %v785 = vmul.f32 %v776, %v783
    %787 = vrot.lane.b32.xlu0 %v785, 32
    %v788 = vpop.permute.xlu0 %787
    %v790 = vadd.f32 %v780, %v788
    %v791 = vtanh.pop %v790
    %793 = vrot.lane.b32.xlu0 %v791, 64
    %v794 = vpop.permute.xlu0 %793
    %v796 = vmul.f32 %v776, %v794
    %v798 = vrot.slane %v796, 2
    %799 = vrot.lane.b32.xlu0 %v798, 32
    %v800 = vpop.permute.xlu0 %799
    %v801 = vsel %vm162, %v800, 0
    %803 = vmatprep.subr.mxu0 0.0
    %804 = vmatpush1.msra.mxu0 %v158
    %805 = vmatprep.subr.mxu0 0.0
    %806 = vmatpush1.msra.mxu0 %v159
    %807 = vmatprep.subr.mxu0 0.0
    %808 = vmatpush1.msra.mxu0 %v160
    %809 = vmatprep.subr.mxu0 0.0
    %810 = vmatpush1.msra.mxu0 %v161
    %811 = vmatprep.subr.mxu0 0.0
    %812 = vmatpush1.msra.mxu0 0.0
    %813 = vmatprep.subr.mxu0 0.0
    %814 = vmatpush1.msra.mxu0 0.0
    %815 = vmatprep.subr.mxu0 0.0
    %816 = vmatpush1.msra.mxu0 0.0
    %817 = vmatprep.subr.mxu0 0.0
    %818 = vmatpush1.msra.mxu0 0.0
    %819 = vmatprep.subr.mxu0 0.0
    %820 = vmatpush1.msra.mxu0 0.0
    %821 = vmatprep.subr.mxu0 0.0
    %822 = vmatpush1.msra.mxu0 0.0
    %823 = vmatprep.subr.mxu0 0.0
    %824 = vmatpush1.msra.mxu0 0.0
    %825 = vmatprep.subr.mxu0 0.0
    %826 = vmatpush1.msra.mxu0 0.0
    %827 = vmatprep.subr.mxu0 0.0
    %828 = vmatpush1.msra.mxu0 0.0
    %829 = vmatprep.subr.mxu0 0.0
    %830 = vmatpush1.msra.mxu0 0.0
    %831 = vmatprep.subr.mxu0 0.0
    %832 = vmatpush1.msra.mxu0 0.0
    %833 = vmatprep.subr.mxu0 0.0
    %834 = vmatpush1.msra.mxu0 0.0
    %835 = vmatprep.subr.mxu0 0.0
    %836 = vmatpush1.msra.mxu0 0.0
    %837 = vmatprep.subr.mxu0 0.0
    %838 = vmatpush1.msra.mxu0 0.0
    %839 = vmatprep.subr.mxu0 0.0
    %840 = vmatpush1.msra.mxu0 0.0
    %841 = vmatprep.subr.mxu0 0.0
    %842 = vmatpush1.msra.mxu0 0.0
    %843 = vmatprep.subr.mxu0 0.0
    %844 = vmatpush1.msra.mxu0 0.0
    %845 = vmatprep.subr.mxu0 0.0
    %846 = vmatpush1.msra.mxu0 0.0
    %847 = vmatprep.subr.mxu0 0.0
    %848 = vmatpush1.msra.mxu0 0.0
    %849 = vmatprep.subr.mxu0 0.0
    %850 = vmatpush1.msra.mxu0 0.0
    %851 = vmatprep.subr.mxu0 0.0
    %852 = vmatpush1.msra.mxu0 0.0
    %853 = vmatprep.subr.mxu0 0.0
    %854 = vmatpush1.msra.mxu0 0.0
    %855 = vmatprep.subr.mxu0 0.0
    %856 = vmatpush1.msra.mxu0 0.0
    %857 = vmatprep.subr.mxu0 0.0
    %858 = vmatpush1.msra.mxu0 0.0
    %859 = vmatprep.subr.mxu0 0.0
    %860 = vmatpush1.msra.mxu0 0.0
    %861 = vmatprep.subr.mxu0 0.0
    %862 = vmatpush1.msra.mxu0 0.0
    %863 = vmatprep.subr.mxu0 0.0
    %864 = vmatpush1.msra.mxu0 0.0
    %865 = vmatprep.subr.mxu0 0.0
    %866 = vmatpush1.msra.mxu0 0.0
    %867 = vmatprep.mubr.f32.mxu0 0.0
    %868 = vmatmul.mubr.f32.gmra.mrb[0].mxu0 %v801
    %v869 = vpop.f32.mrb[0].mxu0
    %v870 = vadd.f32 0.0, %v869
    %v871 = vpop.f32.mrb[0].mxu0
    %872 = vdwg.mxu0
    %v874 = vrot.slane %v870, 4
    %v876 = vadd.f32 %v155, %v874
    %v877 = vxor.u32 %v876, 2147483648
    %v878 = vmul.f32 %v877, 1.442695
    %v879 = vpow.pop %v878
    %v880 = vadd.f32 %v879, 1.0
    %v881 = vrcp.pop %v880
    %v882 = vmul.f32 1.0, %v881
    %v883 = vtanh.pop %v876
    %v884 = vsel %vm61, %v883, %v882
    %v886 = vrot.slane %v790, 6
    %v888 = vmul.f32 %v884, %v886
    %890 = vrot.lane.b32.xlu0 %v884, 64
    %v891 = vpop.permute.xlu0 %890
    %v893 = vmul.f32 %v884, %v891
    %895 = vrot.lane.b32.xlu0 %v893, 32
    %v896 = vpop.permute.xlu0 %895
    %v898 = vadd.f32 %v888, %v896
    %v899 = vtanh.pop %v898
    %901 = vrot.lane.b32.xlu0 %v899, 64
    %v902 = vpop.permute.xlu0 %901
    %v904 = vmul.f32 %v884, %v902
    %v906 = vrot.slane %v904, 4
    %907 = vrot.lane.b32.xlu0 %v906, 32
    %v908 = vpop.permute.xlu0 %907
    %v909 = vsel %vm162, %v908, 0
    %911 = vmatprep.subr.mxu0 0.0
    %912 = vmatpush1.msra.mxu0 %v158
    %913 = vmatprep.subr.mxu0 0.0
    %914 = vmatpush1.msra.mxu0 %v159
    %915 = vmatprep.subr.mxu0 0.0
    %916 = vmatpush1.msra.mxu0 %v160
    %917 = vmatprep.subr.mxu0 0.0
    %918 = vmatpush1.msra.mxu0 %v161
    %919 = vmatprep.subr.mxu0 0.0
    %920 = vmatpush1.msra.mxu0 0.0
    %921 = vmatprep.subr.mxu0 0.0
    %922 = vmatpush1.msra.mxu0 0.0
    %923 = vmatprep.subr.mxu0 0.0
    %924 = vmatpush1.msra.mxu0 0.0
    %925 = vmatprep.subr.mxu0 0.0
    %926 = vmatpush1.msra.mxu0 0.0
    %927 = vmatprep.subr.mxu0 0.0
    %928 = vmatpush1.msra.mxu0 0.0
    %929 = vmatprep.subr.mxu0 0.0
    %930 = vmatpush1.msra.mxu0 0.0
    %931 = vmatprep.subr.mxu0 0.0
    %932 = vmatpush1.msra.mxu0 0.0
    %933 = vmatprep.subr.mxu0 0.0
    %934 = vmatpush1.msra.mxu0 0.0
    %935 = vmatprep.subr.mxu0 0.0
    %936 = vmatpush1.msra.mxu0 0.0
    %937 = vmatprep.subr.mxu0 0.0
    %938 = vmatpush1.msra.mxu0 0.0
    %939 = vmatprep.subr.mxu0 0.0
    %940 = vmatpush1.msra.mxu0 0.0
    %941 = vmatprep.subr.mxu0 0.0
    %942 = vmatpush1.msra.mxu0 0.0
    %943 = vmatprep.subr.mxu0 0.0
    %944 = vmatpush1.msra.mxu0 0.0
    %945 = vmatprep.subr.mxu0 0.0
    %946 = vmatpush1.msra.mxu0 0.0
    %947 = vmatprep.subr.mxu0 0.0
    %948 = vmatpush1.msra.mxu0 0.0
    %949 = vmatprep.subr.mxu0 0.0
    %950 = vmatpush1.msra.mxu0 0.0
    %951 = vmatprep.subr.mxu0 0.0
    %952 = vmatpush1.msra.mxu0 0.0
    %953 = vmatprep.subr.mxu0 0.0
    %954 = vmatpush1.msra.mxu0 0.0
    %955 = vmatprep.subr.mxu0 0.0
    %956 = vmatpush1.msra.mxu0 0.0
    %957 = vmatprep.subr.mxu0 0.0
    %958 = vmatpush1.msra.mxu0 0.0
    %959 = vmatprep.subr.mxu0 0.0
    %960 = vmatpush1.msra.mxu0 0.0
    %961 = vmatprep.subr.mxu0 0.0
    %962 = vmatpush1.msra.mxu0 0.0
    %963 = vmatprep.subr.mxu0 0.0
    %964 = vmatpush1.msra.mxu0 0.0
    %965 = vmatprep.subr.mxu0 0.0
    %966 = vmatpush1.msra.mxu0 0.0
    %967 = vmatprep.subr.mxu0 0.0
    %968 = vmatpush1.msra.mxu0 0.0
    %969 = vmatprep.subr.mxu0 0.0
    %970 = vmatpush1.msra.mxu0 0.0
    %971 = vmatprep.subr.mxu0 0.0
    %972 = vmatpush1.msra.mxu0 0.0
    %973 = vmatprep.subr.mxu0 0.0
    %974 = vmatpush1.msra.mxu0 0.0
    %975 = vmatprep.mubr.f32.mxu0 0.0
    %976 = vmatmul.mubr.f32.gmra.mrb[0].mxu0 %v909
    %v977 = vpop.f32.mrb[0].mxu0
    %v978 = vadd.f32 0.0, %v977
    %v979 = vpop.f32.mrb[0].mxu0
    %980 = vdwg.mxu0
    %v982 = vrot.slane %v978, 2
    %v984 = vadd.f32 %v155, %v982
    %v985 = vxor.u32 %v984, 2147483648
    %v986 = vmul.f32 %v985, 1.442695
    %v987 = vpow.pop %v986
    %v988 = vadd.f32 %v987, 1.0
    %v989 = vrcp.pop %v988
    %v990 = vmul.f32 1.0, %v989
    %v991 = vtanh.pop %v984
    %v992 = vsel %vm61, %v991, %v990
    %v994 = vrot.slane %v898, 6
    %v996 = vmul.f32 %v992, %v994
    %998 = vrot.lane.b32.xlu0 %v992, 64
    %v999 = vpop.permute.xlu0 %998
    %v1001 = vmul.f32 %v992, %v999
    %1003 = vrot.lane.b32.xlu0 %v1001, 32
    %v1004 = vpop.permute.xlu0 %1003
    %v1006 = vadd.f32 %v996, %v1004
    %v1007 = vtanh.pop %v1006
    %1009 = vrot.lane.b32.xlu0 %v1007, 64
    %v1010 = vpop.permute.xlu0 %1009
    %v1012 = vmul.f32 %v992, %v1010
    %vm1013 = vcmask 1041408
    %v1014 = vsel %vm1013, %v261, %v368
    %v1015 = vsel %vm79, %v1014, %v476
    %vm1016 = vcmask 1045504
    %v1017 = vsel %vm1016, %v1015, %v584
    %v1018 = vsel %vm1013, %v689, %v796
    %v1019 = vsel %vm79, %v1018, %v904
    %v1020 = vsel %vm1016, %v1019, %v1012
    %v1021 = vld [vmem:[%s4] sm:$0xff]
    %v1022 = vld [vmem:[%s4 + $0x8] sm:$0xff]
    %v1023 = vld [vmem:[%s4 + $0x10] sm:$0xff]
    %v1024 = vld [vmem:[%s4 + $0x18] sm:$0xff]
    %v1025 = vld [vmem:[%s6] sm:$0x1]
    %v1027 = vlaneseq
    %v1028 = vshrl.u32 %v1027, 7
    %v1029 = vsub.s32 0, %v1028
    %v1030 = vrot.slane %v1025, %v1029
    %1034 = vrot.lane.b32.xlu0 %v1017, 32
    %v1035 = vpop.permute.xlu0 %1034
    %1036 = vrot.lane.b32.xlu0 %v1020, 32
    %v1037 = vpop.permute.xlu0 %1036
    %v1038 = vsel %vm162, %v1035, 0
    %v1040 = vsel %vm162, %v1037, 0
    %1042 = vmatprep.subr.mxu0 0.0
    %1043 = vmatpush1.msra.mxu0 %v1021
    %1044 = vmatprep.subr.mxu0 0.0
    %1045 = vmatpush1.msra.mxu0 %v1022
    %1046 = vmatprep.subr.mxu0 0.0
    %1047 = vmatpush1.msra.mxu0 %v1023
    %1048 = vmatprep.subr.mxu0 0.0
    %1049 = vmatpush1.msra.mxu0 %v1024
    %1050 = vmatprep.subr.mxu0 0.0
    %1051 = vmatpush1.msra.mxu0 0.0
    %1052 = vmatprep.subr.mxu0 0.0
    %1053 = vmatpush1.msra.mxu0 0.0
    %1054 = vmatprep.subr.mxu0 0.0
    %1055 = vmatpush1.msra.mxu0 0.0
    %1056 = vmatprep.subr.mxu0 0.0
    %1057 = vmatpush1.msra.mxu0 0.0
    %1058 = vmatprep.subr.mxu0 0.0
    %1059 = vmatpush1.msra.mxu0 0.0
    %1060 = vmatprep.subr.mxu0 0.0
    %1061 = vmatpush1.msra.mxu0 0.0
    %1062 = vmatprep.subr.mxu0 0.0
    %1063 = vmatpush1.msra.mxu0 0.0
    %1064 = vmatprep.subr.mxu0 0.0
    %1065 = vmatpush1.msra.mxu0 0.0
    %1066 = vmatprep.subr.mxu0 0.0
    %1067 = vmatpush1.msra.mxu0 0.0
    %1068 = vmatprep.subr.mxu0 0.0
    %1069 = vmatpush1.msra.mxu0 0.0
    %1070 = vmatprep.subr.mxu0 0.0
    %1071 = vmatpush1.msra.mxu0 0.0
    %1072 = vmatprep.subr.mxu0 0.0
    %1073 = vmatpush1.msra.mxu0 0.0
    %1074 = vmatprep.subr.mxu0 0.0
    %1075 = vmatpush1.msra.mxu0 0.0
    %1076 = vmatprep.subr.mxu0 0.0
    %1077 = vmatpush1.msra.mxu0 0.0
    %1078 = vmatprep.subr.mxu0 0.0
    %1079 = vmatpush1.msra.mxu0 0.0
    %1080 = vmatprep.subr.mxu0 0.0
    %1081 = vmatpush1.msra.mxu0 0.0
    %1082 = vmatprep.subr.mxu0 0.0
    %1083 = vmatpush1.msra.mxu0 0.0
    %1084 = vmatprep.subr.mxu0 0.0
    %1085 = vmatpush1.msra.mxu0 0.0
    %1086 = vmatprep.subr.mxu0 0.0
    %1087 = vmatpush1.msra.mxu0 0.0
    %1088 = vmatprep.subr.mxu0 0.0
    %1089 = vmatpush1.msra.mxu0 0.0
    %1090 = vmatprep.subr.mxu0 0.0
    %1091 = vmatpush1.msra.mxu0 0.0
    %1092 = vmatprep.subr.mxu0 0.0
    %1093 = vmatpush1.msra.mxu0 0.0
    %1094 = vmatprep.subr.mxu0 0.0
    %1095 = vmatpush1.msra.mxu0 0.0
    %1096 = vmatprep.subr.mxu0 0.0
    %1097 = vmatpush1.msra.mxu0 0.0
    %1098 = vmatprep.subr.mxu0 0.0
    %1099 = vmatpush1.msra.mxu0 0.0
    %1100 = vmatprep.subr.mxu0 0.0
    %1101 = vmatpush1.msra.mxu0 0.0
    %1102 = vmatprep.subr.mxu0 0.0
    %1103 = vmatpush1.msra.mxu0 0.0
    %1104 = vmatprep.subr.mxu0 0.0
    %1105 = vmatpush1.msra.mxu0 0.0
    %1106 = vmatprep.mubr.f32.mxu0 0.0
    %1107 = vmatmul.mubr.f32.gmra.mrb[0].mxu0 %v1038
    %v1108 = vpop.f32.mrb[0].mxu0
    %v1109 = vadd.f32 %v1030, %v1108
    %v1110 = vpop.f32.mrb[0].mxu0
    %1111 = vmatprep.mubr.f32.mxu0 0.0
    %1112 = vmatmul.mubr.f32.gmra.mrb[0].mxu0 %v1040
    %v1113 = vpop.f32.mrb[0].mxu0
    %v1114 = vadd.f32 %v1030, %v1113
    %v1115 = vpop.f32.mrb[0].mxu0
    %1116 = vdwg.mxu0
    %v1117 = vld [vmem:[%s5] sm:$0xff]
    %v1118 = vld [vmem:[%s5 + $0x8] sm:$0xff]
    %v1119 = vld [vmem:[%s5 + $0x10] sm:$0xff]
    %v1120 = vld [vmem:[%s5 + $0x18] sm:$0xff]
    %1121 = vmatprep.subr.mxu0 0.0
    %1122 = vmatpush1.msra.mxu0 %v1117
    %1123 = vmatprep.subr.mxu0 0.0
    %1124 = vmatpush1.msra.mxu0 %v1118
    %1125 = vmatprep.subr.mxu0 0.0
    %1126 = vmatpush1.msra.mxu0 %v1119
    %1127 = vmatprep.subr.mxu0 0.0
    %1128 = vmatpush1.msra.mxu0 %v1120
    %1129 = vmatprep.subr.mxu0 0.0
    %1130 = vmatpush1.msra.mxu0 0.0
    %1131 = vmatprep.subr.mxu0 0.0
    %1132 = vmatpush1.msra.mxu0 0.0
    %1133 = vmatprep.subr.mxu0 0.0
    %1134 = vmatpush1.msra.mxu0 0.0
    %1135 = vmatprep.subr.mxu0 0.0
    %1136 = vmatpush1.msra.mxu0 0.0
    %1137 = vmatprep.subr.mxu0 0.0
    %1138 = vmatpush1.msra.mxu0 0.0
    %1139 = vmatprep.subr.mxu0 0.0
    %1140 = vmatpush1.msra.mxu0 0.0
    %1141 = vmatprep.subr.mxu0 0.0
    %1142 = vmatpush1.msra.mxu0 0.0
    %1143 = vmatprep.subr.mxu0 0.0
    %1144 = vmatpush1.msra.mxu0 0.0
    %1145 = vmatprep.subr.mxu0 0.0
    %1146 = vmatpush1.msra.mxu0 0.0
    %1147 = vmatprep.subr.mxu0 0.0
    %1148 = vmatpush1.msra.mxu0 0.0
    %1149 = vmatprep.subr.mxu0 0.0
    %1150 = vmatpush1.msra.mxu0 0.0
    %1151 = vmatprep.subr.mxu0 0.0
    %1152 = vmatpush1.msra.mxu0 0.0
    %1153 = vmatprep.subr.mxu0 0.0
    %1154 = vmatpush1.msra.mxu0 0.0
    %1155 = vmatprep.subr.mxu0 0.0
    %1156 = vmatpush1.msra.mxu0 0.0
    %1157 = vmatprep.subr.mxu0 0.0
    %1158 = vmatpush1.msra.mxu0 0.0
    %1159 = vmatprep.subr.mxu0 0.0
    %1160 = vmatpush1.msra.mxu0 0.0
    %1161 = vmatprep.subr.mxu0 0.0
    %1162 = vmatpush1.msra.mxu0 0.0
    %1163 = vmatprep.subr.mxu0 0.0
    %1164 = vmatpush1.msra.mxu0 0.0
    %1165 = vmatprep.subr.mxu0 0.0
    %1166 = vmatpush1.msra.mxu0 0.0
    %1167 = vmatprep.subr.mxu0 0.0
    %1168 = vmatpush1.msra.mxu0 0.0
    %1169 = vmatprep.subr.mxu0 0.0
    %1170 = vmatpush1.msra.mxu0 0.0
    %1171 = vmatprep.subr.mxu0 0.0
    %1172 = vmatpush1.msra.mxu0 0.0
    %1173 = vmatprep.subr.mxu0 0.0
    %1174 = vmatpush1.msra.mxu0 0.0
    %1175 = vmatprep.subr.mxu0 0.0
    %1176 = vmatpush1.msra.mxu0 0.0
    %1177 = vmatprep.subr.mxu0 0.0
    %1178 = vmatpush1.msra.mxu0 0.0
    %1179 = vmatprep.subr.mxu0 0.0
    %1180 = vmatpush1.msra.mxu0 0.0
    %1181 = vmatprep.subr.mxu0 0.0
    %1182 = vmatpush1.msra.mxu0 0.0
    %1183 = vmatprep.subr.mxu0 0.0
    %1184 = vmatpush1.msra.mxu0 0.0
    %1185 = vmatprep.mubr.f32.mxu0 0.0
    %1186 = vmatmul.mubr.f32.gmra.mrb[0].mxu0 %v164
    %v1187 = vpop.f32.mrb[0].mxu0
    %v1188 = vadd.f32 0.0, %v1187
    %v1189 = vpop.f32.mrb[0].mxu0
    %1190 = vdwg.mxu0
    %v1191 = vadd.f32 %v1109, %v1188
    %v1192 = vxor.u32 %v1191, 2147483648
    %v1193 = vmul.f32 %v1192, 1.442695
    %v1194 = vpow.pop %v1193
    %v1195 = vadd.f32 %v1194, 1.0
    %v1196 = vrcp.pop %v1195
    %v1197 = vmul.f32 1.0, %v1196
    %v1198 = vtanh.pop %v1191
    %v1199 = vsel %vm61, %v1198, %v1197
    %v1200 = vmul.f32 %v1199, 0.0
    %1202 = vrot.lane.b32.xlu0 %v1199, 64
    %v1203 = vpop.permute.xlu0 %1202
    %v1205 = vmul.f32 %v1199, %v1203
    %1207 = vrot.lane.b32.xlu0 %v1205, 32
    %v1208 = vpop.permute.xlu0 %1207
    %v1210 = vadd.f32 %v1200, %v1208
    %v1211 = vtanh.pop %v1210
    %1213 = vrot.lane.b32.xlu0 %v1211, 64
    %v1214 = vpop.permute.xlu0 %1213
    %v1216 = vmul.f32 %v1199, %v1214
    %1218 = vrot.lane.b32.xlu0 %v1216, 32
    %v1219 = vpop.permute.xlu0 %1218
    %v1220 = vsel %vm162, %v1219, 0
    %1222 = vmatprep.subr.mxu0 0.0
    %1223 = vmatpush1.msra.mxu0 %v1117
    %1224 = vmatprep.subr.mxu0 0.0
    %1225 = vmatpush1.msra.mxu0 %v1118
    %1226 = vmatprep.subr.mxu0 0.0
    %1227 = vmatpush1.msra.mxu0 %v1119
    %1228 = vmatprep.subr.mxu0 0.0
    %1229 = vmatpush1.msra.mxu0 %v1120
    %1230 = vmatprep.subr.mxu0 0.0
    %1231 = vmatpush1.msra.mxu0 0.0
    %1232 = vmatprep.subr.mxu0 0.0
    %1233 = vmatpush1.msra.mxu0 0.0
    %1234 = vmatprep.subr.mxu0 0.0
    %1235 = vmatpush1.msra.mxu0 0.0
    %1236 = vmatprep.subr.mxu0 0.0
    %1237 = vmatpush1.msra.mxu0 0.0
    %1238 = vmatprep.subr.mxu0 0.0
    %1239 = vmatpush1.msra.mxu0 0.0
    %1240 = vmatprep.subr.mxu0 0.0
    %1241 = vmatpush1.msra.mxu0 0.0
    %1242 = vmatprep.subr.mxu0 0.0
    %1243 = vmatpush1.msra.mxu0 0.0
    %1244 = vmatprep.subr.mxu0 0.0
    %1245 = vmatpush1.msra.mxu0 0.0
    %1246 = vmatprep.subr.mxu0 0.0
    %1247 = vmatpush1.msra.mxu0 0.0
    %1248 = vmatprep.subr.mxu0 0.0
    %1249 = vmatpush1.msra.mxu0 0.0
    %1250 = vmatprep.subr.mxu0 0.0
    %1251 = vmatpush1.msra.mxu0 0.0
    %1252 = vmatprep.subr.mxu0 0.0
    %1253 = vmatpush1.msra.mxu0 0.0
    %1254 = vmatprep.subr.mxu0 0.0
    %1255 = vmatpush1.msra.mxu0 0.0
    %1256 = vmatprep.subr.mxu0 0.0
    %1257 = vmatpush1.msra.mxu0 0.0
    %1258 = vmatprep.subr.mxu0 0.0
    %1259 = vmatpush1.msra.mxu0 0.0
    %1260 = vmatprep.subr.mxu0 0.0
    %1261 = vmatpush1.msra.mxu0 0.0
    %1262 = vmatprep.subr.mxu0 0.0
    %1263 = vmatpush1.msra.mxu0 0.0
    %1264 = vmatprep.subr.mxu0 0.0
    %1265 = vmatpush1.msra.mxu0 0.0
    %1266 = vmatprep.subr.mxu0 0.0
    %1267 = vmatpush1.msra.mxu0 0.0
    %1268 = vmatprep.subr.mxu0 0.0
    %1269 = vmatpush1.msra.mxu0 0.0
    %1270 = vmatprep.subr.mxu0 0.0
    %1271 = vmatpush1.msra.mxu0 0.0
    %1272 = vmatprep.subr.mxu0 0.0
    %1273 = vmatpush1.msra.mxu0 0.0
    %1274 = vmatprep.subr.mxu0 0.0
    %1275 = vmatpush1.msra.mxu0 0.0
    %1276 = vmatprep.subr.mxu0 0.0
    %1277 = vmatpush1.msra.mxu0 0.0
    %1278 = vmatprep.subr.mxu0 0.0
    %1279 = vmatpush1.msra.mxu0 0.0
    %1280 = vmatprep.subr.mxu0 0.0
    %1281 = vmatpush1.msra.mxu0 0.0
    %1282 = vmatprep.subr.mxu0 0.0
    %1283 = vmatpush1.msra.mxu0 0.0
    %1284 = vmatprep.subr.mxu0 0.0
    %1285 = vmatpush1.msra.mxu0 0.0
    %1286 = vmatprep.mubr.f32.mxu0 0.0
    %1287 = vmatmul.mubr.f32.gmra.mrb[0].mxu0 %v1220
    %v1288 = vpop.f32.mrb[0].mxu0
    %v1289 = vadd.f32 0.0, %v1288
    %v1290 = vpop.f32.mrb[0].mxu0
    %1291 = vdwg.mxu0
    %v1293 = vrot.slane %v1289, 6
    %v1295 = vadd.f32 %v1109, %v1293
    %v1296 = vxor.u32 %v1295, 2147483648
    %v1297 = vmul.f32 %v1296, 1.442695
    %v1298 = vpow.pop %v1297
    %v1299 = vadd.f32 %v1298, 1.0
    %v1300 = vrcp.pop %v1299
    %v1301 = vmul.f32 1.0, %v1300
    %v1302 = vtanh.pop %v1295
    %v1303 = vsel %vm61, %v1302, %v1301
    %v1305 = vrot.slane %v1210, 6
    %v1307 = vmul.f32 %v1303, %v1305
    %1309 = vrot.lane.b32.xlu0 %v1303, 64
    %v1310 = vpop.permute.xlu0 %1309
    %v1312 = vmul.f32 %v1303, %v1310
    %1314 = vrot.lane.b32.xlu0 %v1312, 32
    %v1315 = vpop.permute.xlu0 %1314
    %v1317 = vadd.f32 %v1307, %v1315
    %v1318 = vtanh.pop %v1317
    %1320 = vrot.lane.b32.xlu0 %v1318, 64
    %v1321 = vpop.permute.xlu0 %1320
    %v1323 = vmul.f32 %v1303, %v1321
    %v1325 = vrot.slane %v1323, 2
    %1326 = vrot.lane.b32.xlu0 %v1325, 32
    %v1327 = vpop.permute.xlu0 %1326
    %v1328 = vsel %vm162, %v1327, 0
    %1330 = vmatprep.subr.mxu0 0.0
    %1331 = vmatpush1.msra.mxu0 %v1117
    %1332 = vmatprep.subr.mxu0 0.0
    %1333 = vmatpush1.msra.mxu0 %v1118
    %1334 = vmatprep.subr.mxu0 0.0
    %1335 = vmatpush1.msra.mxu0 %v1119
    %1336 = vmatprep.subr.mxu0 0.0
    %1337 = vmatpush1.msra.mxu0 %v1120
    %1338 = vmatprep.subr.mxu0 0.0
    %1339 = vmatpush1.msra.mxu0 0.0
    %1340 = vmatprep.subr.mxu0 0.0
    %1341 = vmatpush1.msra.mxu0 0.0
    %1342 = vmatprep.subr.mxu0 0.0
    %1343 = vmatpush1.msra.mxu0 0.0
    %1344 = vmatprep.subr.mxu0 0.0
    %1345 = vmatpush1.msra.mxu0 0.0
    %1346 = vmatprep.subr.mxu0 0.0
    %1347 = vmatpush1.msra.mxu0 0.0
    %1348 = vmatprep.subr.mxu0 0.0
    %1349 = vmatpush1.msra.mxu0 0.0
    %1350 = vmatprep.subr.mxu0 0.0
    %1351 = vmatpush1.msra.mxu0 0.0
    %1352 = vmatprep.subr.mxu0 0.0
    %1353 = vmatpush1.msra.mxu0 0.0
    %1354 = vmatprep.subr.mxu0 0.0
    %1355 = vmatpush1.msra.mxu0 0.0
    %1356 = vmatprep.subr.mxu0 0.0
    %1357 = vmatpush1.msra.mxu0 0.0
    %1358 = vmatprep.subr.mxu0 0.0
    %1359 = vmatpush1.msra.mxu0 0.0
    %1360 = vmatprep.subr.mxu0 0.0
    %1361 = vmatpush1.msra.mxu0 0.0
    %1362 = vmatprep.subr.mxu0 0.0
    %1363 = vmatpush1.msra.mxu0 0.0
    %1364 = vmatprep.subr.mxu0 0.0
    %1365 = vmatpush1.msra.mxu0 0.0
    %1366 = vmatprep.subr.mxu0 0.0
    %1367 = vmatpush1.msra.mxu0 0.0
    %1368 = vmatprep.subr.mxu0 0.0
    %1369 = vmatpush1.msra.mxu0 0.0
    %1370 = vmatprep.subr.mxu0 0.0
    %1371 = vmatpush1.msra.mxu0 0.0
    %1372 = vmatprep.subr.mxu0 0.0
    %1373 = vmatpush1.msra.mxu0 0.0
    %1374 = vmatprep.subr.mxu0 0.0
    %1375 = vmatpush1.msra.mxu0 0.0
    %1376 = vmatprep.subr.mxu0 0.0
    %1377 = vmatpush1.msra.mxu0 0.0
    %1378 = vmatprep.subr.mxu0 0.0
    %1379 = vmatpush1.msra.mxu0 0.0
    %1380 = vmatprep.subr.mxu0 0.0
    %1381 = vmatpush1.msra.mxu0 0.0
    %1382 = vmatprep.subr.mxu0 0.0
    %1383 = vmatpush1.msra.mxu0 0.0
    %1384 = vmatprep.subr.mxu0 0.0
    %1385 = vmatpush1.msra.mxu0 0.0
    %1386 = vmatprep.subr.mxu0 0.0
    %1387 = vmatpush1.msra.mxu0 0.0
    %1388 = vmatprep.subr.mxu0 0.0
    %1389 = vmatpush1.msra.mxu0 0.0
    %1390 = vmatprep.subr.mxu0 0.0
    %1391 = vmatpush1.msra.mxu0 0.0
    %1392 = vmatprep.subr.mxu0 0.0
    %1393 = vmatpush1.msra.mxu0 0.0
    %1394 = vmatprep.mubr.f32.mxu0 0.0
    %1395 = vmatmul.mubr.f32.gmra.mrb[0].mxu0 %v1328
    %v1396 = vpop.f32.mrb[0].mxu0
    %v1397 = vadd.f32 0.0, %v1396
    %v1398 = vpop.f32.mrb[0].mxu0
    %1399 = vdwg.mxu0
    %v1401 = vrot.slane %v1397, 4
    %v1403 = vadd.f32 %v1109, %v1401
    %v1404 = vxor.u32 %v1403, 2147483648
    %v1405 = vmul.f32 %v1404, 1.442695
    %v1406 = vpow.pop %v1405
    %v1407 = vadd.f32 %v1406, 1.0
    %v1408 = vrcp.pop %v1407
    %v1409 = vmul.f32 1.0, %v1408
    %v1410 = vtanh.pop %v1403
    %v1411 = vsel %vm61, %v1410, %v1409
    %v1413 = vrot.slane %v1317, 6
    %v1415 = vmul.f32 %v1411, %v1413
    %1417 = vrot.lane.b32.xlu0 %v1411, 64
    %v1418 = vpop.permute.xlu0 %1417
    %v1420 = vmul.f32 %v1411, %v1418
    %1422 = vrot.lane.b32.xlu0 %v1420, 32
    %v1423 = vpop.permute.xlu0 %1422
    %v1425 = vadd.f32 %v1415, %v1423
    %v1426 = vtanh.pop %v1425
    %1428 = vrot.lane.b32.xlu0 %v1426, 64
    %v1429 = vpop.permute.xlu0 %1428
    %v1431 = vmul.f32 %v1411, %v1429
    %v1433 = vrot.slane %v1431, 4
    %1434 = vrot.lane.b32.xlu0 %v1433, 32
    %v1435 = vpop.permute.xlu0 %1434
    %v1436 = vsel %vm162, %v1435, 0
    %1438 = vmatprep.subr.mxu0 0.0
    %1439 = vmatpush1.msra.mxu0 %v1117
    %1440 = vmatprep.subr.mxu0 0.0
    %1441 = vmatpush1.msra.mxu0 %v1118
    %1442 = vmatprep.subr.mxu0 0.0
    %1443 = vmatpush1.msra.mxu0 %v1119
    %1444 = vmatprep.subr.mxu0 0.0
    %1445 = vmatpush1.msra.mxu0 %v1120
    %1446 = vmatprep.subr.mxu0 0.0
    %1447 = vmatpush1.msra.mxu0 0.0
    %1448 = vmatprep.subr.mxu0 0.0
    %1449 = vmatpush1.msra.mxu0 0.0
    %1450 = vmatprep.subr.mxu0 0.0
    %1451 = vmatpush1.msra.mxu0 0.0
    %1452 = vmatprep.subr.mxu0 0.0
    %1453 = vmatpush1.msra.mxu0 0.0
    %1454 = vmatprep.subr.mxu0 0.0
    %1455 = vmatpush1.msra.mxu0 0.0
    %1456 = vmatprep.subr.mxu0 0.0
    %1457 = vmatpush1.msra.mxu0 0.0
    %1458 = vmatprep.subr.mxu0 0.0
    %1459 = vmatpush1.msra.mxu0 0.0
    %1460 = vmatprep.subr.mxu0 0.0
    %1461 = vmatpush1.msra.mxu0 0.0
    %1462 = vmatprep.subr.mxu0 0.0
    %1463 = vmatpush1.msra.mxu0 0.0
    %1464 = vmatprep.subr.mxu0 0.0
    %1465 = vmatpush1.msra.mxu0 0.0
    %1466 = vmatprep.subr.mxu0 0.0
    %1467 = vmatpush1.msra.mxu0 0.0
    %1468 = vmatprep.subr.mxu0 0.0
    %1469 = vmatpush1.msra.mxu0 0.0
    %1470 = vmatprep.subr.mxu0 0.0
    %1471 = vmatpush1.msra.mxu0 0.0
    %1472 = vmatprep.subr.mxu0 0.0
    %1473 = vmatpush1.msra.mxu0 0.0
    %1474 = vmatprep.subr.mxu0 0.0
    %1475 = vmatpush1.msra.mxu0 0.0
    %1476 = vmatprep.subr.mxu0 0.0
    %1477 = vmatpush1.msra.mxu0 0.0
    %1478 = vmatprep.subr.mxu0 0.0
    %1479 = vmatpush1.msra.mxu0 0.0
    %1480 = vmatprep.subr.mxu0 0.0
    %1481 = vmatpush1.msra.mxu0 0.0
    %1482 = vmatprep.subr.mxu0 0.0
    %1483 = vmatpush1.msra.mxu0 0.0
    %1484 = vmatprep.subr.mxu0 0.0
    %1485 = vmatpush1.msra.mxu0 0.0
    %1486 = vmatprep.subr.mxu0 0.0
    %1487 = vmatpush1.msra.mxu0 0.0
    %1488 = vmatprep.subr.mxu0 0.0
    %1489 = vmatpush1.msra.mxu0 0.0
    %1490 = vmatprep.subr.mxu0 0.0
    %1491 = vmatpush1.msra.mxu0 0.0
    %1492 = vmatprep.subr.mxu0 0.0
    %1493 = vmatpush1.msra.mxu0 0.0
    %1494 = vmatprep.subr.mxu0 0.0
    %1495 = vmatpush1.msra.mxu0 0.0
    %1496 = vmatprep.subr.mxu0 0.0
    %1497 = vmatpush1.msra.mxu0 0.0
    %1498 = vmatprep.subr.mxu0 0.0
    %1499 = vmatpush1.msra.mxu0 0.0
    %1500 = vmatprep.subr.mxu0 0.0
    %1501 = vmatpush1.msra.mxu0 0.0
    %1502 = vmatprep.mubr.f32.mxu0 0.0
    %1503 = vmatmul.mubr.f32.gmra.mrb[0].mxu0 %v1436
    %v1504 = vpop.f32.mrb[0].mxu0
    %v1505 = vadd.f32 0.0, %v1504
    %v1506 = vpop.f32.mrb[0].mxu0
    %1507 = vdwg.mxu0
    %v1509 = vrot.slane %v1505, 2
    %v1511 = vadd.f32 %v1109, %v1509
    %v1512 = vxor.u32 %v1511, 2147483648
    %v1513 = vmul.f32 %v1512, 1.442695
    %v1514 = vpow.pop %v1513
    %v1515 = vadd.f32 %v1514, 1.0
    %v1516 = vrcp.pop %v1515
    %v1517 = vmul.f32 1.0, %v1516
    %v1518 = vtanh.pop %v1511
    %v1519 = vsel %vm61, %v1518, %v1517
    %v1521 = vrot.slane %v1425, 6
    %v1523 = vmul.f32 %v1519, %v1521
    %1525 = vrot.lane.b32.xlu0 %v1519, 64
    %v1526 = vpop.permute.xlu0 %1525
    %v1528 = vmul.f32 %v1519, %v1526
    %1530 = vrot.lane.b32.xlu0 %v1528, 32
    %v1531 = vpop.permute.xlu0 %1530
    %v1533 = vadd.f32 %v1523, %v1531
    %v1534 = vtanh.pop %v1533
    %1536 = vrot.lane.b32.xlu0 %v1534, 64
    %v1537 = vpop.permute.xlu0 %1536
    %v1539 = vmul.f32 %v1519, %v1537
    %v1541 = vrot.slane %v1539, 6
    %1542 = vrot.lane.b32.xlu0 %v1541, 32
    %v1543 = vpop.permute.xlu0 %1542
    %v1544 = vsel %vm162, %v1543, 0
    %1546 = vmatprep.subr.mxu0 0.0
    %1547 = vmatpush1.msra.mxu0 %v1117
    %1548 = vmatprep.subr.mxu0 0.0
    %1549 = vmatpush1.msra.mxu0 %v1118
    %1550 = vmatprep.subr.mxu0 0.0
    %1551 = vmatpush1.msra.mxu0 %v1119
    %1552 = vmatprep.subr.mxu0 0.0
    %1553 = vmatpush1.msra.mxu0 %v1120
    %1554 = vmatprep.subr.mxu0 0.0
    %1555 = vmatpush1.msra.mxu0 0.0
    %1556 = vmatprep.subr.mxu0 0.0
    %1557 = vmatpush1.msra.mxu0 0.0
    %1558 = vmatprep.subr.mxu0 0.0
    %1559 = vmatpush1.msra.mxu0 0.0
    %1560 = vmatprep.subr.mxu0 0.0
    %1561 = vmatpush1.msra.mxu0 0.0
    %1562 = vmatprep.subr.mxu0 0.0
    %1563 = vmatpush1.msra.mxu0 0.0
    %1564 = vmatprep.subr.mxu0 0.0
    %1565 = vmatpush1.msra.mxu0 0.0
    %1566 = vmatprep.subr.mxu0 0.0
    %1567 = vmatpush1.msra.mxu0 0.0
    %1568 = vmatprep.subr.mxu0 0.0
    %1569 = vmatpush1.msra.mxu0 0.0
    %1570 = vmatprep.subr.mxu0 0.0
    %1571 = vmatpush1.msra.mxu0 0.0
    %1572 = vmatprep.subr.mxu0 0.0
    %1573 = vmatpush1.msra.mxu0 0.0
    %1574 = vmatprep.subr.mxu0 0.0
    %1575 = vmatpush1.msra.mxu0 0.0
    %1576 = vmatprep.subr.mxu0 0.0
    %1577 = vmatpush1.msra.mxu0 0.0
    %1578 = vmatprep.subr.mxu0 0.0
    %1579 = vmatpush1.msra.mxu0 0.0
    %1580 = vmatprep.subr.mxu0 0.0
    %1581 = vmatpush1.msra.mxu0 0.0
    %1582 = vmatprep.subr.mxu0 0.0
    %1583 = vmatpush1.msra.mxu0 0.0
    %1584 = vmatprep.subr.mxu0 0.0
    %1585 = vmatpush1.msra.mxu0 0.0
    %1586 = vmatprep.subr.mxu0 0.0
    %1587 = vmatpush1.msra.mxu0 0.0
    %1588 = vmatprep.subr.mxu0 0.0
    %1589 = vmatpush1.msra.mxu0 0.0
    %1590 = vmatprep.subr.mxu0 0.0
    %1591 = vmatpush1.msra.mxu0 0.0
    %1592 = vmatprep.subr.mxu0 0.0
    %1593 = vmatpush1.msra.mxu0 0.0
    %1594 = vmatprep.subr.mxu0 0.0
    %1595 = vmatpush1.msra.mxu0 0.0
    %1596 = vmatprep.subr.mxu0 0.0
    %1597 = vmatpush1.msra.mxu0 0.0
    %1598 = vmatprep.subr.mxu0 0.0
    %1599 = vmatpush1.msra.mxu0 0.0
    %1600 = vmatprep.subr.mxu0 0.0
    %1601 = vmatpush1.msra.mxu0 0.0
    %1602 = vmatprep.subr.mxu0 0.0
    %1603 = vmatpush1.msra.mxu0 0.0
    %1604 = vmatprep.subr.mxu0 0.0
    %1605 = vmatpush1.msra.mxu0 0.0
    %1606 = vmatprep.subr.mxu0 0.0
    %1607 = vmatpush1.msra.mxu0 0.0
    %1608 = vmatprep.subr.mxu0 0.0
    %1609 = vmatpush1.msra.mxu0 0.0
    %1610 = vmatprep.mubr.f32.mxu0 0.0
    %1611 = vmatmul.mubr.f32.gmra.mrb[0].mxu0 %v1544
    %v1612 = vpop.f32.mrb[0].mxu0
    %v1613 = vadd.f32 0.0, %v1612
    %v1614 = vpop.f32.mrb[0].mxu0
    %1615 = vdwg.mxu0
    %v1616 = vadd.f32 %v1114, %v1613
    %v1617 = vxor.u32 %v1616, 2147483648
    %v1618 = vmul.f32 %v1617, 1.442695
    %v1619 = vpow.pop %v1618
    %v1620 = vadd.f32 %v1619, 1.0
    %v1621 = vrcp.pop %v1620
    %v1622 = vmul.f32 1.0, %v1621
    %v1623 = vtanh.pop %v1616
    %v1624 = vsel %vm61, %v1623, %v1622
    %v1626 = vrot.slane %v1533, 6
    %v1628 = vmul.f32 %v1624, %v1626
    %1630 = vrot.lane.b32.xlu0 %v1624, 64
    %v1631 = vpop.permute.xlu0 %1630
    %v1633 = vmul.f32 %v1624, %v1631
    %1635 = vrot.lane.b32.xlu0 %v1633, 32
    %v1636 = vpop.permute.xlu0 %1635
    %v1638 = vadd.f32 %v1628, %v1636
    %v1639 = vtanh.pop %v1638
    %1641 = vrot.lane.b32.xlu0 %v1639, 64
    %v1642 = vpop.permute.xlu0 %1641
    %v1644 = vmul.f32 %v1624, %v1642
    %1646 = vrot.lane.b32.xlu0 %v1644, 32
    %v1647 = vpop.permute.xlu0 %1646
    %v1648 = vsel %vm162, %v1647, 0
    %1650 = vmatprep.subr.mxu0 0.0
    %1651 = vmatpush1.msra.mxu0 %v1117
    %1652 = vmatprep.subr.mxu0 0.0
    %1653 = vmatpush1.msra.mxu0 %v1118
    %1654 = vmatprep.subr.mxu0 0.0
    %1655 = vmatpush1.msra.mxu0 %v1119
    %1656 = vmatprep.subr.mxu0 0.0
    %1657 = vmatpush1.msra.mxu0 %v1120
    %1658 = vmatprep.subr.mxu0 0.0
    %1659 = vmatpush1.msra.mxu0 0.0
    %1660 = vmatprep.subr.mxu0 0.0
    %1661 = vmatpush1.msra.mxu0 0.0
    %1662 = vmatprep.subr.mxu0 0.0
    %1663 = vmatpush1.msra.mxu0 0.0
    %1664 = vmatprep.subr.mxu0 0.0
    %1665 = vmatpush1.msra.mxu0 0.0
    %1666 = vmatprep.subr.mxu0 0.0
    %1667 = vmatpush1.msra.mxu0 0.0
    %1668 = vmatprep.subr.mxu0 0.0
    %1669 = vmatpush1.msra.mxu0 0.0
    %1670 = vmatprep.subr.mxu0 0.0
    %1671 = vmatpush1.msra.mxu0 0.0
    %1672 = vmatprep.subr.mxu0 0.0
    %1673 = vmatpush1.msra.mxu0 0.0
    %1674 = vmatprep.subr.mxu0 0.0
    %1675 = vmatpush1.msra.mxu0 0.0
    %1676 = vmatprep.subr.mxu0 0.0
    %1677 = vmatpush1.msra.mxu0 0.0
    %1678 = vmatprep.subr.mxu0 0.0
    %1679 = vmatpush1.msra.mxu0 0.0
    %1680 = vmatprep.subr.mxu0 0.0
    %1681 = vmatpush1.msra.mxu0 0.0
    %1682 = vmatprep.subr.mxu0 0.0
    %1683 = vmatpush1.msra.mxu0 0.0
    %1684 = vmatprep.subr.mxu0 0.0
    %1685 = vmatpush1.msra.mxu0 0.0
    %1686 = vmatprep.subr.mxu0 0.0
    %1687 = vmatpush1.msra.mxu0 0.0
    %1688 = vmatprep.subr.mxu0 0.0
    %1689 = vmatpush1.msra.mxu0 0.0
    %1690 = vmatprep.subr.mxu0 0.0
    %1691 = vmatpush1.msra.mxu0 0.0
    %1692 = vmatprep.subr.mxu0 0.0
    %1693 = vmatpush1.msra.mxu0 0.0
    %1694 = vmatprep.subr.mxu0 0.0
    %1695 = vmatpush1.msra.mxu0 0.0
    %1696 = vmatprep.subr.mxu0 0.0
    %1697 = vmatpush1.msra.mxu0 0.0
    %1698 = vmatprep.subr.mxu0 0.0
    %1699 = vmatpush1.msra.mxu0 0.0
    %1700 = vmatprep.subr.mxu0 0.0
    %1701 = vmatpush1.msra.mxu0 0.0
    %1702 = vmatprep.subr.mxu0 0.0
    %1703 = vmatpush1.msra.mxu0 0.0
    %1704 = vmatprep.subr.mxu0 0.0
    %1705 = vmatpush1.msra.mxu0 0.0
    %1706 = vmatprep.subr.mxu0 0.0
    %1707 = vmatpush1.msra.mxu0 0.0
    %1708 = vmatprep.subr.mxu0 0.0
    %1709 = vmatpush1.msra.mxu0 0.0
    %1710 = vmatprep.subr.mxu0 0.0
    %1711 = vmatpush1.msra.mxu0 0.0
    %1712 = vmatprep.subr.mxu0 0.0
    %1713 = vmatpush1.msra.mxu0 0.0
    %1714 = vmatprep.mubr.f32.mxu0 0.0
    %1715 = vmatmul.mubr.f32.gmra.mrb[0].mxu0 %v1648
    %v1716 = vpop.f32.mrb[0].mxu0
    %v1717 = vadd.f32 0.0, %v1716
    %v1718 = vpop.f32.mrb[0].mxu0
    %1719 = vdwg.mxu0
    %v1721 = vrot.slane %v1717, 6
    %v1723 = vadd.f32 %v1114, %v1721
    %v1724 = vxor.u32 %v1723, 2147483648
    %v1725 = vmul.f32 %v1724, 1.442695
    %v1726 = vpow.pop %v1725
    %v1727 = vadd.f32 %v1726, 1.0
    %v1728 = vrcp.pop %v1727
    %v1729 = vmul.f32 1.0, %v1728
    %v1730 = vtanh.pop %v1723
    %v1731 = vsel %vm61, %v1730, %v1729
    %v1733 = vrot.slane %v1638, 6
    %v1735 = vmul.f32 %v1731, %v1733
    %1737 = vrot.lane.b32.xlu0 %v1731, 64
    %v1738 = vpop.permute.xlu0 %1737
    %v1740 = vmul.f32 %v1731, %v1738
    %1742 = vrot.lane.b32.xlu0 %v1740, 32
    %v1743 = vpop.permute.xlu0 %1742
    %v1745 = vadd.f32 %v1735, %v1743
    %v1746 = vtanh.pop %v1745
    %1748 = vrot.lane.b32.xlu0 %v1746, 64
    %v1749 = vpop.permute.xlu0 %1748
    %v1751 = vmul.f32 %v1731, %v1749
    %v1753 = vrot.slane %v1751, 2
    %1754 = vrot.lane.b32.xlu0 %v1753, 32
    %v1755 = vpop.permute.xlu0 %1754
    %v1756 = vsel %vm162, %v1755, 0
    %1758 = vmatprep.subr.mxu0 0.0
    %1759 = vmatpush1.msra.mxu0 %v1117
    %1760 = vmatprep.subr.mxu0 0.0
    %1761 = vmatpush1.msra.mxu0 %v1118
    %1762 = vmatprep.subr.mxu0 0.0
    %1763 = vmatpush1.msra.mxu0 %v1119
    %1764 = vmatprep.subr.mxu0 0.0
    %1765 = vmatpush1.msra.mxu0 %v1120
    %1766 = vmatprep.subr.mxu0 0.0
    %1767 = vmatpush1.msra.mxu0 0.0
    %1768 = vmatprep.subr.mxu0 0.0
    %1769 = vmatpush1.msra.mxu0 0.0
    %1770 = vmatprep.subr.mxu0 0.0
    %1771 = vmatpush1.msra.mxu0 0.0
    %1772 = vmatprep.subr.mxu0 0.0
    %1773 = vmatpush1.msra.mxu0 0.0
    %1774 = vmatprep.subr.mxu0 0.0
    %1775 = vmatpush1.msra.mxu0 0.0
    %1776 = vmatprep.subr.mxu0 0.0
    %1777 = vmatpush1.msra.mxu0 0.0
    %1778 = vmatprep.subr.mxu0 0.0
    %1779 = vmatpush1.msra.mxu0 0.0
    %1780 = vmatprep.subr.mxu0 0.0
    %1781 = vmatpush1.msra.mxu0 0.0
    %1782 = vmatprep.subr.mxu0 0.0
    %1783 = vmatpush1.msra.mxu0 0.0
    %1784 = vmatprep.subr.mxu0 0.0
    %1785 = vmatpush1.msra.mxu0 0.0
    %1786 = vmatprep.subr.mxu0 0.0
    %1787 = vmatpush1.msra.mxu0 0.0
    %1788 = vmatprep.subr.mxu0 0.0
    %1789 = vmatpush1.msra.mxu0 0.0
    %1790 = vmatprep.subr.mxu0 0.0
    %1791 = vmatpush1.msra.mxu0 0.0
    %1792 = vmatprep.subr.mxu0 0.0
    %1793 = vmatpush1.msra.mxu0 0.0
    %1794 = vmatprep.subr.mxu0 0.0
    %1795 = vmatpush1.msra.mxu0 0.0
    %1796 = vmatprep.subr.mxu0 0.0
    %1797 = vmatpush1.msra.mxu0 0.0
    %1798 = vmatprep.subr.mxu0 0.0
    %1799 = vmatpush1.msra.mxu0 0.0
    %1800 = vmatprep.subr.mxu0 0.0
    %1801 = vmatpush1.msra.mxu0 0.0
    %1802 = vmatprep.subr.mxu0 0.0
    %1803 = vmatpush1.msra.mxu0 0.0
    %1804 = vmatprep.subr.mxu0 0.0
    %1805 = vmatpush1.msra.mxu0 0.0
    %1806 = vmatprep.subr.mxu0 0.0
    %1807 = vmatpush1.msra.mxu0 0.0
    %1808 = vmatprep.subr.mxu0 0.0
    %1809 = vmatpush1.msra.mxu0 0.0
    %1810 = vmatprep.subr.mxu0 0.0
    %1811 = vmatpush1.msra.mxu0 0.0
    %1812 = vmatprep.subr.mxu0 0.0
    %1813 = vmatpush1.msra.mxu0 0.0
    %1814 = vmatprep.subr.mxu0 0.0
    %1815 = vmatpush1.msra.mxu0 0.0
    %1816 = vmatprep.subr.mxu0 0.0
    %1817 = vmatpush1.msra.mxu0 0.0
    %1818 = vmatprep.subr.mxu0 0.0
    %1819 = vmatpush1.msra.mxu0 0.0
    %1820 = vmatprep.subr.mxu0 0.0
    %1821 = vmatpush1.msra.mxu0 0.0
    %1822 = vmatprep.mubr.f32.mxu0 0.0
    %1823 = vmatmul.mubr.f32.gmra.mrb[0].mxu0 %v1756
    %v1824 = vpop.f32.mrb[0].mxu0
    %v1825 = vadd.f32 0.0, %v1824
    %v1826 = vpop.f32.mrb[0].mxu0
    %1827 = vdwg.mxu0
    %v1829 = vrot.slane %v1825, 4
    %v1831 = vadd.f32 %v1114, %v1829
    %v1832 = vxor.u32 %v1831, 2147483648
    %v1833 = vmul.f32 %v1832, 1.442695
    %v1834 = vpow.pop %v1833
    %v1835 = vadd.f32 %v1834, 1.0
    %v1836 = vrcp.pop %v1835
    %v1837 = vmul.f32 1.0, %v1836
    %v1838 = vtanh.pop %v1831
    %v1839 = vsel %vm61, %v1838, %v1837
    %v1841 = vrot.slane %v1745, 6
    %v1843 = vmul.f32 %v1839, %v1841
    %1845 = vrot.lane.b32.xlu0 %v1839, 64
    %v1846 = vpop.permute.xlu0 %1845
    %v1848 = vmul.f32 %v1839, %v1846
    %1850 = vrot.lane.b32.xlu0 %v1848, 32
    %v1851 = vpop.permute.xlu0 %1850
    %v1853 = vadd.f32 %v1843, %v1851
    %v1854 = vtanh.pop %v1853
    %1856 = vrot.lane.b32.xlu0 %v1854, 64
    %v1857 = vpop.permute.xlu0 %1856
    %v1859 = vmul.f32 %v1839, %v1857
    %v1861 = vrot.slane %v1859, 4
    %1862 = vrot.lane.b32.xlu0 %v1861, 32
    %v1863 = vpop.permute.xlu0 %1862
    %v1864 = vsel %vm162, %v1863, 0
    %1866 = vmatprep.subr.mxu0 0.0
    %1867 = vmatpush1.msra.mxu0 %v1117
    %1868 = vmatprep.subr.mxu0 0.0
    %1869 = vmatpush1.msra.mxu0 %v1118
    %1870 = vmatprep.subr.mxu0 0.0
    %1871 = vmatpush1.msra.mxu0 %v1119
    %1872 = vmatprep.subr.mxu0 0.0
    %1873 = vmatpush1.msra.mxu0 %v1120
    %1874 = vmatprep.subr.mxu0 0.0
    %1875 = vmatpush1.msra.mxu0 0.0
    %1876 = vmatprep.subr.mxu0 0.0
    %1877 = vmatpush1.msra.mxu0 0.0
    %1878 = vmatprep.subr.mxu0 0.0
    %1879 = vmatpush1.msra.mxu0 0.0
    %1880 = vmatprep.subr.mxu0 0.0
    %1881 = vmatpush1.msra.mxu0 0.0
    %1882 = vmatprep.subr.mxu0 0.0
    %1883 = vmatpush1.msra.mxu0 0.0
    %1884 = vmatprep.subr.mxu0 0.0
    %1885 = vmatpush1.msra.mxu0 0.0
    %1886 = vmatprep.subr.mxu0 0.0
    %1887 = vmatpush1.msra.mxu0 0.0
    %1888 = vmatprep.subr.mxu0 0.0
    %1889 = vmatpush1.msra.mxu0 0.0
    %1890 = vmatprep.subr.mxu0 0.0
    %1891 = vmatpush1.msra.mxu0 0.0
    %1892 = vmatprep.subr.mxu0 0.0
    %1893 = vmatpush1.msra.mxu0 0.0
    %1894 = vmatprep.subr.mxu0 0.0
    %1895 = vmatpush1.msra.mxu0 0.0
    %1896 = vmatprep.subr.mxu0 0.0
    %1897 = vmatpush1.msra.mxu0 0.0
    %1898 = vmatprep.subr.mxu0 0.0
    %1899 = vmatpush1.msra.mxu0 0.0
    %1900 = vmatprep.subr.mxu0 0.0
    %1901 = vmatpush1.msra.mxu0 0.0
    %1902 = vmatprep.subr.mxu0 0.0
    %1903 = vmatpush1.msra.mxu0 0.0
    %1904 = vmatprep.subr.mxu0 0.0
    %1905 = vmatpush1.msra.mxu0 0.0
    %1906 = vmatprep.subr.mxu0 0.0
    %1907 = vmatpush1.msra.mxu0 0.0
    %1908 = vmatprep.subr.mxu0 0.0
    %1909 = vmatpush1.msra.mxu0 0.0
    %1910 = vmatprep.subr.mxu0 0.0
    %1911 = vmatpush1.msra.mxu0 0.0
    %1912 = vmatprep.subr.mxu0 0.0
    %1913 = vmatpush1.msra.mxu0 0.0
    %1914 = vmatprep.subr.mxu0 0.0
    %1915 = vmatpush1.msra.mxu0 0.0
    %1916 = vmatprep.subr.mxu0 0.0
    %1917 = vmatpush1.msra.mxu0 0.0
    %1918 = vmatprep.subr.mxu0 0.0
    %1919 = vmatpush1.msra.mxu0 0.0
    %1920 = vmatprep.subr.mxu0 0.0
    %1921 = vmatpush1.msra.mxu0 0.0
    %1922 = vmatprep.subr.mxu0 0.0
    %1923 = vmatpush1.msra.mxu0 0.0
    %1924 = vmatprep.subr.mxu0 0.0
    %1925 = vmatpush1.msra.mxu0 0.0
    %1926 = vmatprep.subr.mxu0 0.0
    %1927 = vmatpush1.msra.mxu0 0.0
    %1928 = vmatprep.subr.mxu0 0.0
    %1929 = vmatpush1.msra.mxu0 0.0
    %1930 = vmatprep.mubr.f32.mxu0 0.0
    %1931 = vmatmul.mubr.f32.gmra.mrb[0].mxu0 %v1864
    %v1932 = vpop.f32.mrb[0].mxu0
    %v1933 = vadd.f32 0.0, %v1932
    %v1934 = vpop.f32.mrb[0].mxu0
    %1935 = vdwg.mxu0
    %v1937 = vrot.slane %v1933, 2
    %v1939 = vadd.f32 %v1114, %v1937
    %v1940 = vxor.u32 %v1939, 2147483648
    %v1941 = vmul.f32 %v1940, 1.442695
    %v1942 = vpow.pop %v1941
    %v1943 = vadd.f32 %v1942, 1.0
    %v1944 = vrcp.pop %v1943
    %v1945 = vmul.f32 1.0, %v1944
    %v1946 = vtanh.pop %v1939
    %v1947 = vsel %vm61, %v1946, %v1945
    %v1949 = vrot.slane %v1853, 6
    %v1951 = vmul.f32 %v1947, %v1949
    %1953 = vrot.lane.b32.xlu0 %v1947, 64
    %v1954 = vpop.permute.xlu0 %1953
    %v1956 = vmul.f32 %v1947, %v1954
    %1958 = vrot.lane.b32.xlu0 %v1956, 32
    %v1959 = vpop.permute.xlu0 %1958
    %v1961 = vadd.f32 %v1951, %v1959
    %v1962 = vtanh.pop %v1961
    %1964 = vrot.lane.b32.xlu0 %v1962, 64
    %v1965 = vpop.permute.xlu0 %1964
    %v1967 = vmul.f32 %v1947, %v1965
    %v1968 = vld [vmem:[%s7] sm:$0xff]
    %v1969 = vld [vmem:[%s7 + $0x8] sm:$0xff]
    %v1970 = vld [vmem:[%s7 + $0x10] sm:$0xff]
    %v1971 = vld [vmem:[%s7 + $0x18] sm:$0xff]
    %v1972 = vld [vmem:[#allocation5] sm:$0x1]
    %v1974 = vlaneseq
    %v1975 = vshrl.u32 %v1974, 7
    %v1976 = vsub.s32 0, %v1975
    %v1977 = vrot.slane %v1972, %v1976
    %v1980 = vrot.slane %v1967, 6
    %1981 = vrot.lane.b32.xlu0 %v1980, 32
    %v1982 = vpop.permute.xlu0 %1981
    %v1983 = vsel %vm162, %v1982, 0
    %1985 = vmatprep.subr.mxu0 0.0
    %1986 = vmatpush1.msra.mxu0 %v1968
    %1987 = vmatprep.subr.mxu0 0.0
    %1988 = vmatpush1.msra.mxu0 %v1969
    %1989 = vmatprep.subr.mxu0 0.0
    %1990 = vmatpush1.msra.mxu0 %v1970
    %1991 = vmatprep.subr.mxu0 0.0
    %1992 = vmatpush1.msra.mxu0 %v1971
    %1993 = vmatprep.subr.mxu0 0.0
    %1994 = vmatpush1.msra.mxu0 0.0
    %1995 = vmatprep.subr.mxu0 0.0
    %1996 = vmatpush1.msra.mxu0 0.0
    %1997 = vmatprep.subr.mxu0 0.0
    %1998 = vmatpush1.msra.mxu0 0.0
    %1999 = vmatprep.subr.mxu0 0.0
    %2000 = vmatpush1.msra.mxu0 0.0
    %2001 = vmatprep.subr.mxu0 0.0
    %2002 = vmatpush1.msra.mxu0 0.0
    %2003 = vmatprep.subr.mxu0 0.0
    %2004 = vmatpush1.msra.mxu0 0.0
    %2005 = vmatprep.subr.mxu0 0.0
    %2006 = vmatpush1.msra.mxu0 0.0
    %2007 = vmatprep.subr.mxu0 0.0
    %2008 = vmatpush1.msra.mxu0 0.0
    %2009 = vmatprep.subr.mxu0 0.0
    %2010 = vmatpush1.msra.mxu0 0.0
    %2011 = vmatprep.subr.mxu0 0.0
    %2012 = vmatpush1.msra.mxu0 0.0
    %2013 = vmatprep.subr.mxu0 0.0
    %2014 = vmatpush1.msra.mxu0 0.0
    %2015 = vmatprep.subr.mxu0 0.0
    %2016 = vmatpush1.msra.mxu0 0.0
    %2017 = vmatprep.subr.mxu0 0.0
    %2018 = vmatpush1.msra.mxu0 0.0
    %2019 = vmatprep.subr.mxu0 0.0
    %2020 = vmatpush1.msra.mxu0 0.0
    %2021 = vmatprep.subr.mxu0 0.0
    %2022 = vmatpush1.msra.mxu0 0.0
    %2023 = vmatprep.subr.mxu0 0.0
    %2024 = vmatpush1.msra.mxu0 0.0
    %2025 = vmatprep.subr.mxu0 0.0
    %2026 = vmatpush1.msra.mxu0 0.0
    %2027 = vmatprep.subr.mxu0 0.0
    %2028 = vmatpush1.msra.mxu0 0.0
    %2029 = vmatprep.subr.mxu0 0.0
    %2030 = vmatpush1.msra.mxu0 0.0
    %2031 = vmatprep.subr.mxu0 0.0
    %2032 = vmatpush1.msra.mxu0 0.0
    %2033 = vmatprep.subr.mxu0 0.0
    %2034 = vmatpush1.msra.mxu0 0.0
    %2035 = vmatprep.subr.mxu0 0.0
    %2036 = vmatpush1.msra.mxu0 0.0
    %2037 = vmatprep.subr.mxu0 0.0
    %2038 = vmatpush1.msra.mxu0 0.0
    %2039 = vmatprep.subr.mxu0 0.0
    %2040 = vmatpush1.msra.mxu0 0.0
    %2041 = vmatprep.subr.mxu0 0.0
    %2042 = vmatpush1.msra.mxu0 0.0
    %2043 = vmatprep.subr.mxu0 0.0
    %2044 = vmatpush1.msra.mxu0 0.0
    %2045 = vmatprep.subr.mxu0 0.0
    %2046 = vmatpush1.msra.mxu0 0.0
    %2047 = vmatprep.subr.mxu0 0.0
    %2048 = vmatpush1.msra.mxu0 0.0
    %2049 = vmatprep.mubr.f32.mxu0 0.0
    %2050 = vmatmul.mubr.f32.gmra.mrb[0].mxu0 %v1983
    %v2051 = vpop.f32.mrb[0].mxu0
    %v2052 = vadd.f32 %v1977, %v2051
    %v2053 = vpop.f32.mrb[0].mxu0
    %2054 = vdwg.mxu0
    %vm2055 = vcmask 58368
    %2056 = vst.msk [vmem:[#allocation7] sm:$0x3] %vm2055, %v2052
    // Predicated region
    $region46: #{lstm_model_forward.1} parent=1 // pred_check
      _
    $region47: #{lstm_model_forward.1} parent=1 // pred_check_branch
      %2058 = sbr.rel (0) target = $region49
    $region48: #{lstm_model_forward.1} parent=1 // pred_region
      %s2060 = ssub.s32 32, 32
      %2061 = vsyncadd [#allocation4], %s2060
      %s2063 = sshll.u32 [#allocation7], 4
      %s2064 = int_to_ptr.vmem [resolvable:$true] %s2063
      %2066 = dma.vmem_to_hbm [thread:$0]  %s2064, 32, %s9, [#allocation4]
    $region49: #{lstm_model_forward.1} parent=1 // pred_fallthru
      _
    // Predicated region
    $region50: #{lstm_model_forward.1} parent=1 // pred_check
      _
    $region51: #{lstm_model_forward.1} parent=1 // pred_check_branch
      %2068 = sbr.rel (0) target = $region53
    $region52: #{lstm_model_forward.1} parent=1 // pred_region
      %2069 = dma.done [#allocation4], 32
    $region53: #{lstm_model_forward.1} parent=1 // pred_fallthru
      _
    %2070 = vsyncpa [#allocation3], 1
    %2071 = vsyncpa [#allocation6], 1
    %2072 = vsyncpa [#allocation4], 1

</llo_original>
